<compile_context>
chip_gen: v7x
topology: tpu7x:2x2x1
jax: 0.10.0
libtpu: 0.0.40
codegen_flags: <defaults>
</compile_context>

<pallas_src>
import functools

import jax
import jax.numpy as jnp
from jax.experimental import pallas as pl
from jax.experimental.pallas import tpu as pltpu


def _round_up(x, m):
    return (x + m - 1) // m * m


# ---------------------------------------------------------------------------
# Kernel 1: z = x @ W + b  (bf16 MXU, f32 acc)  + BN batch statistics
# ---------------------------------------------------------------------------
def _linear_stats_kernel(x_ref, w_ref, b_ref, z_ref, stats_ref, acc_ref,
                         *, m_total, tile_m, eps):
    i = pl.program_id(0)

    @pl.when(i == 0)
    def _():
        acc_ref[...] = jnp.zeros_like(acc_ref)

    # bf16 operands feed the MXU; accumulation / bias / stats stay in f32.
    z = jnp.dot(x_ref[...], w_ref[...], preferred_element_type=jnp.float32)
    z = z + b_ref[...]                       # (tile_m, N) f32
    z_ref[...] = z

    # Mask batch-padding rows out of the BatchNorm statistics.
    row = i * tile_m + jax.lax.broadcasted_iota(jnp.int32, z.shape, 0)
    zv = jnp.where(row < m_total, z, 0.0)
    partial = jnp.concatenate(
        [jnp.sum(zv, axis=0, keepdims=True),
         jnp.sum(zv * zv, axis=0, keepdims=True)], axis=0)   # (2, N)
    acc_ref[...] += partial

    @pl.when(i == pl.num_programs(0) - 1)
    def _():
        inv_m = 1.0 / m_total
        mean = acc_ref[0:1, :] * inv_m
        var = acc_ref[1:2, :] * inv_m - mean * mean          # biased variance
        rstd = jax.lax.rsqrt(jnp.maximum(var, 0.0) + eps)
        stats_ref[...] = jnp.concatenate([mean, rstd], axis=0)


# ---------------------------------------------------------------------------
# Kernel 2: y = leaky_relu((z - mean) * rstd * gamma + beta)
# ---------------------------------------------------------------------------
def _bn_act_kernel(z_ref, stats_ref, gamma_ref, beta_ref, o_ref,
                   *, negative_slope):
    mean = stats_ref[0:1, :]
    rstd = stats_ref[1:2, :]
    scale = gamma_ref[...] * rstd            # (1, N)
    shift = beta_ref[...] - mean * scale     # (1, N)
    y = z_ref[...] * scale + shift
    o_ref[...] = jnp.where(y > 0, y, negative_slope * y).astype(o_ref.dtype)


# ---------------------------------------------------------------------------
# Wrapper
# ---------------------------------------------------------------------------
def linear_block_forward(x, w_t, b, gamma, beta, *,
                         eps=1e-5, negative_slope=0.2, tile_m=256,
                         out_dtype=jnp.float32):
    """LinearBlock forward.

    x      : (M, K) float32
    w_t    : (K, N) float32  == PyTorch Linear.weight.T (pre-transposed at init)
    b      : (N,)   Linear bias
    gamma  : (N,)   BatchNorm1d weight
    beta   : (N,)   BatchNorm1d bias
    """
    M, K = x.shape
    Kw, N = w_t.shape
    assert Kw == K

    # bf16 MXU operands; everything else stays f32.
    x_bf = x.astype(jnp.bfloat16)
    w_bf = w_t.astype(jnp.bfloat16)
    b2 = b.reshape(1, N).astype(jnp.float32)
    g2 = gamma.reshape(1, N).astype(jnp.float32)
    be2 = beta.reshape(1, N).astype(jnp.float32)

    # Tile the batch axis (multiple of 8 sublanes); pad the batch to a whole
    # number of tiles.  Padded rows are masked out of the BN stats in-kernel.
    tile_m = max(8, min(tile_m, _round_up(M, 8)))
    m_pad = _round_up(M, tile_m)
    if m_pad != M:
        x_bf = jnp.pad(x_bf, ((0, m_pad - M), (0, 0)))
    n_tiles = m_pad // tile_m

    z, stats = pl.pallas_call(
        functools.partial(_linear_stats_kernel,
                          m_total=M, tile_m=tile_m, eps=eps),
        out_shape=(jax.ShapeDtypeStruct((m_pad, N), jnp.float32),
                   jax.ShapeDtypeStruct((2, N), jnp.float32)),
        grid=(n_tiles,),
        in_specs=[
            pl.BlockSpec((tile_m, K), lambda i: (i, 0)),   # x tile
            pl.BlockSpec((K, N), lambda i: (0, 0)),        # weight (resident)
            pl.BlockSpec((1, N), lambda i: (0, 0)),        # bias   (resident)
        ],
        out_specs=(
            pl.BlockSpec((tile_m, N), lambda i: (i, 0)),   # z tile
            pl.BlockSpec((2, N), lambda i: (0, 0)),        # stats (accumulator)
        ),
        scratch_shapes=[pltpu.VMEM((2, N), jnp.float32)],
        compiler_params=pltpu.CompilerParams(
            dimension_semantics=("arbitrary",)),           # stats accumulate
    )(x_bf, w_bf, b2)

    out = pl.pallas_call(
        functools.partial(_bn_act_kernel, negative_slope=negative_slope),
        out_shape=jax.ShapeDtypeStruct((m_pad, N), out_dtype),
        grid=(n_tiles,),
        in_specs=[
            pl.BlockSpec((tile_m, N), lambda i: (i, 0)),
            pl.BlockSpec((2, N), lambda i: (0, 0)),
            pl.BlockSpec((1, N), lambda i: (0, 0)),
            pl.BlockSpec((1, N), lambda i: (0, 0)),
        ],
        out_specs=pl.BlockSpec((tile_m, N), lambda i: (i, 0)),
        compiler_params=pltpu.CompilerParams(
            dimension_semantics=("parallel",)),            # megacore on v7x
    )(z, stats, g2, be2)

    return out[:M]


if __name__ == "__main__":
    key = jax.random.PRNGKey(0)
    kx, kw, kb = jax.random.split(key, 3)

    batch, in_size, out_size = 512, 512, 256   # small, lane-dense shapes

    x = jax.random.normal(kx, (batch, in_size), jnp.float32)

    # PyTorch-style init: Linear W, b ~ U(-1/sqrt(in), 1/sqrt(in)); the weight
    # is stored pre-transposed as (in, out) == weight.T.  BN gamma=1, beta=0.
    bound = 1.0 / (in_size ** 0.5)
    w_t = jax.random.uniform(kw, (in_size, out_size), jnp.float32, -bound, bound)
    b = jax.random.uniform(kb, (out_size,), jnp.float32, -bound, bound)
    gamma = jnp.ones((out_size,), jnp.float32)
    beta = jnp.zeros((out_size,), jnp.float32)

    fwd = jax.jit(functools.partial(linear_block_forward, tile_m=256))
    out = jax.block_until_ready(fwd(x, w_t, b, gamma, beta))

    # Pure-JAX f32 reference: Linear -> training-mode BatchNorm1d -> LeakyReLU.
    z_ref = x @ w_t + b
    mean = z_ref.mean(axis=0)
    var = z_ref.var(axis=0)                    # biased variance (PyTorch BN)
    y_ref = (z_ref - mean) * jax.lax.rsqrt(var + 1e-5) * gamma + beta
    y_ref = jnp.where(y_ref > 0, y_ref, 0.2 * y_ref)

    assert out.shape == (batch, out_size)
    assert bool(jnp.isfinite(out).all())
    max_err = float(jnp.max(jnp.abs(out - y_ref)))
    assert max_err < 0.1, f"max abs err vs f32 reference = {max_err}"
    print("KERNEL_OK")
</pallas_src>

<mosaic_0001>
module attributes {stable_mosaic.version = 11 : i64} {
  func.func @_linear_stats_kernel(%arg0: i32, %arg1: memref<256x512xbf16, #tpu.memory_space<vmem>>, %arg2: memref<512x256xbf16, #tpu.memory_space<vmem>>, %arg3: memref<1x256xf32, #tpu.memory_space<vmem>>, %arg4: memref<256x256xf32, #tpu.memory_space<vmem>>, %arg5: memref<2x256xf32, #tpu.memory_space<vmem>>, %arg6: memref<2x256xf32, #tpu.memory_space<vmem>>) attributes {dimension_semantics = [#tpu.dimension_semantics<arbitrary>], iteration_bounds = array<i64: 2>, scalar_prefetch = 0 : i64, scratch_operands = 1 : i64, tpu.core_type = #tpu.core_type<tc>, window_params = [{transform_indices = @transform_0, window_bounds = array<i64: 256, 512>}, {pipeline_mode = #tpu.pipeline_mode<synchronous>, transform_indices = @transform_1, window_bounds = array<i64: 512, 256>}, {pipeline_mode = #tpu.pipeline_mode<synchronous>, transform_indices = @transform_2, window_bounds = array<i64: 1, 256>}, {transform_indices = @transform_3, window_bounds = array<i64: 256, 256>}, {pipeline_mode = #tpu.pipeline_mode<synchronous>, transform_indices = @transform_4, window_bounds = array<i64: 2, 256>}]} {
    %c0_i32 = arith.constant 0 : i32
    %0 = arith.cmpi eq, %arg0, %c0_i32 : i32
    %1 = arith.extui %0 : i1 to i32
    %c0_i32_0 = arith.constant 0 : i32
    %2 = arith.cmpi ne, %1, %c0_i32_0 : i32
    scf.if %2 {
      %cst_16 = arith.constant 0.000000e+00 : f32
      %30 = vector.broadcast %cst_16 : f32 to vector<2x256xf32>
      %c0_17 = arith.constant 0 : index
      %c0_18 = arith.constant 0 : index
      %31 = vector.load %arg6[%c0_17, %c0_18] : memref<2x256xf32, #tpu.memory_space<vmem>>, vector<2x256xf32>
      tpu.vector_store %arg6[%c0_17, %c0_18], %30 {strides = array<i32>} : memref<2x256xf32, #tpu.memory_space<vmem>>, vector<2x256xf32>,
    } else {
    }
    %c0 = arith.constant 0 : index
    %c0_1 = arith.constant 0 : index
    %3 = vector.load %arg1[%c0, %c0_1] : memref<256x512xbf16, #tpu.memory_space<vmem>>, vector<256x512xbf16>
    %c0_2 = arith.constant 0 : index
    %c0_3 = arith.constant 0 : index
    %4 = vector.load %arg2[%c0_2, %c0_3] : memref<512x256xbf16, #tpu.memory_space<vmem>>, vector<512x256xbf16>
    %cst = arith.constant dense<0.000000e+00> : vector<256x256xf32>
    %5 = tpu.matmul %3, %4, %cst {dimension_numbers = #tpu.dot_dimension_numbers<[1], [0], [0], [1], [0, 0, 1, 1], [], []>} : vector<256x512xbf16>, vector<512x256xbf16>, vector<256x256xf32> -> vector<256x256xf32>
    %c0_4 = arith.constant 0 : index
    %c0_5 = arith.constant 0 : index
    %6 = vector.load %arg3[%c0_4, %c0_5] : memref<1x256xf32, #tpu.memory_space<vmem>>, vector<1x256xf32>
    %7 = vector.broadcast %6 : vector<1x256xf32> to vector<256x256xf32>
    %8 = arith.addf %5, %7 : vector<256x256xf32>
    %c0_6 = arith.constant 0 : index
    %c0_7 = arith.constant 0 : index
    %9 = vector.load %arg4[%c0_6, %c0_7] : memref<256x256xf32, #tpu.memory_space<vmem>>, vector<256x256xf32>
    tpu.vector_store %arg4[%c0_6, %c0_7], %8 {strides = array<i32>} : memref<256x256xf32, #tpu.memory_space<vmem>>, vector<256x256xf32>,
    %c256_i32 = arith.constant 256 : i32
    %10 = arith.muli %arg0, %c256_i32 : i32
    %11 = tpu.iota {dimensions = array<i32: 0>} : vector<256x256xi32>
    %12 = vector.broadcast %10 : i32 to vector<256x256xi32>
    %13 = arith.addi %12, %11 : vector<256x256xi32>
    %c512_i32 = arith.constant 512 : i32
    %14 = vector.broadcast %c512_i32 : i32 to vector<256x256xi32>
    %15 = arith.cmpi slt, %13, %14 : vector<256x256xi32>
    %cst_8 = arith.constant 0.000000e+00 : f32
    %16 = vector.broadcast %cst_8 : f32 to vector<256x256xf32>
    %17 = arith.select %15, %8, %16 : vector<256x256xi1>, vector<256x256xf32>
    %cst_9 = arith.constant dense<0.000000e+00> : vector<256xf32>
    %18 = vector.multi_reduction <add>, %17, %cst_9 [0] : vector<256x256xf32> to vector<256xf32>
    %19 = vector.shape_cast %18 : vector<256xf32> to vector<1x256xf32>
    %20 = arith.mulf %17, %17 : vector<256x256xf32>
    %cst_10 = arith.constant dense<0.000000e+00> : vector<256xf32>
    %21 = vector.multi_reduction <add>, %20, %cst_10 [0] : vector<256x256xf32> to vector<256xf32>
    %22 = vector.shape_cast %21 : vector<256xf32> to vector<1x256xf32>
    %23 = tpu.concatenate %19, %22 in 0 : vector<1x256xf32>, vector<1x256xf32> -> vector<2x256xf32>
    %c0_11 = arith.constant 0 : index
    %c0_12 = arith.constant 0 : index
    %24 = vector.load %arg6[%c0_11, %c0_12] : memref<2x256xf32, #tpu.memory_space<vmem>>, vector<2x256xf32>
    %25 = arith.addf %24, %23 : vector<2x256xf32>
    %c0_13 = arith.constant 0 : index
    %c0_14 = arith.constant 0 : index
    %26 = vector.load %arg6[%c0_13, %c0_14] : memref<2x256xf32, #tpu.memory_space<vmem>>, vector<2x256xf32>
    tpu.vector_store %arg6[%c0_13, %c0_14], %25 {strides = array<i32>} : memref<2x256xf32, #tpu.memory_space<vmem>>, vector<2x256xf32>,
    %c1_i32 = arith.constant 1 : i32
    %27 = arith.cmpi eq, %arg0, %c1_i32 : i32
    %28 = arith.extui %27 : i1 to i32
    %c0_i32_15 = arith.constant 0 : i32
    %29 = arith.cmpi ne, %28, %c0_i32_15 : i32
    scf.if %29 {
      %c0_16 = arith.constant 0 : index
      %c0_17 = arith.constant 0 : index
      %30 = vector.load %arg6[%c0_16, %c0_17] : memref<2x256xf32, #tpu.memory_space<vmem>>, vector<1x256xf32>
      %cst_18 = arith.constant 0.001953125 : f32
      %31 = vector.broadcast %cst_18 : f32 to vector<1x256xf32>
      %32 = arith.mulf %30, %31 : vector<1x256xf32>
      %c1 = arith.constant 1 : index
      %c0_19 = arith.constant 0 : index
      %33 = vector.load %arg6[%c1, %c0_19] : memref<2x256xf32, #tpu.memory_space<vmem>>, vector<1x256xf32>
      %cst_20 = arith.constant 0.001953125 : f32
      %34 = vector.broadcast %cst_20 : f32 to vector<1x256xf32>
      %35 = arith.mulf %33, %34 : vector<1x256xf32>
      %36 = arith.mulf %32, %32 : vector<1x256xf32>
      %37 = arith.subf %35, %36 : vector<1x256xf32>
      %cst_21 = arith.constant 0.000000e+00 : f32
      %38 = vector.broadcast %cst_21 : f32 to vector<1x256xf32>
      %39 = arith.maximumf %37, %38 : vector<1x256xf32>
      %cst_22 = arith.constant 9.99999974E-6 : f32
      %40 = vector.broadcast %cst_22 : f32 to vector<1x256xf32>
      %41 = arith.addf %39, %40 : vector<1x256xf32>
      %42 = math.rsqrt %41 : vector<1x256xf32>
      %43 = tpu.concatenate %32, %42 in 0 : vector<1x256xf32>, vector<1x256xf32> -> vector<2x256xf32>
      %c0_23 = arith.constant 0 : index
      %c0_24 = arith.constant 0 : index
      %44 = vector.load %arg5[%c0_23, %c0_24] : memref<2x256xf32, #tpu.memory_space<vmem>>, vector<2x256xf32>
      tpu.vector_store %arg5[%c0_23, %c0_24], %43 {strides = array<i32>} : memref<2x256xf32, #tpu.memory_space<vmem>>, vector<2x256xf32>,
    } else {
    }
    return
  }
  func.func @transform_0(%arg0: i32) -> (i32, i32) {
    %c0_i32 = arith.constant 0 : i32
    %c0_i32_0 = arith.constant 0 : i32
    return %arg0, %c0_i32 : i32, i32
  }
  func.func @transform_1(%arg0: i32) -> (i32, i32) {
    %c0_i32 = arith.constant 0 : i32
    %c0_i32_0 = arith.constant 0 : i32
    %c0_i32_1 = arith.constant 0 : i32
    return %c0_i32, %c0_i32_0 : i32, i32
  }
  func.func @transform_2(%arg0: i32) -> (i32, i32) {
    %c0_i32 = arith.constant 0 : i32
    %c0_i32_0 = arith.constant 0 : i32
    %c0_i32_1 = arith.constant 0 : i32
    return %c0_i32, %c0_i32_0 : i32, i32
  }
  func.func @transform_3(%arg0: i32) -> (i32, i32) {
    %c0_i32 = arith.constant 0 : i32
    %c0_i32_0 = arith.constant 0 : i32
    return %arg0, %c0_i32 : i32, i32
  }
  func.func @transform_4(%arg0: i32) -> (i32, i32) {
    %c0_i32 = arith.constant 0 : i32
    %c0_i32_0 = arith.constant 0 : i32
    %c0_i32_1 = arith.constant 0 : i32
    return %c0_i32, %c0_i32_0 : i32, i32
  }
}

module attributes {stable_mosaic.version = 11 : i64} {
  func.func @_bn_act_kernel(%arg0: i32, %arg1: memref<256x256xf32, #tpu.memory_space<vmem>>, %arg2: memref<2x256xf32, #tpu.memory_space<vmem>>, %arg3: memref<1x256xf32, #tpu.memory_space<vmem>>, %arg4: memref<1x256xf32, #tpu.memory_space<vmem>>, %arg5: memref<256x256xf32, #tpu.memory_space<vmem>>) attributes {dimension_semantics = [#tpu.dimension_semantics<parallel>], iteration_bounds = array<i64: 2>, scalar_prefetch = 0 : i64, scratch_operands = 0 : i64, tpu.core_type = #tpu.core_type<tc>, window_params = [{transform_indices = @transform_0, window_bounds = array<i64: 256, 256>}, {pipeline_mode = #tpu.pipeline_mode<synchronous>, transform_indices = @transform_1, window_bounds = array<i64: 2, 256>}, {pipeline_mode = #tpu.pipeline_mode<synchronous>, transform_indices = @transform_2, window_bounds = array<i64: 1, 256>}, {pipeline_mode = #tpu.pipeline_mode<synchronous>, transform_indices = @transform_3, window_bounds = array<i64: 1, 256>}, {transform_indices = @transform_4, window_bounds = array<i64: 256, 256>}]} {
    %c0 = arith.constant 0 : index
    %c0_0 = arith.constant 0 : index
    %0 = vector.load %arg2[%c0, %c0_0] : memref<2x256xf32, #tpu.memory_space<vmem>>, vector<1x256xf32>
    %c1 = arith.constant 1 : index
    %c0_1 = arith.constant 0 : index
    %1 = vector.load %arg2[%c1, %c0_1] : memref<2x256xf32, #tpu.memory_space<vmem>>, vector<1x256xf32>
    %c0_2 = arith.constant 0 : index
    %c0_3 = arith.constant 0 : index
    %2 = vector.load %arg3[%c0_2, %c0_3] : memref<1x256xf32, #tpu.memory_space<vmem>>, vector<1x256xf32>
    %3 = arith.mulf %2, %1 : vector<1x256xf32>
    %c0_4 = arith.constant 0 : index
    %c0_5 = arith.constant 0 : index
    %4 = vector.load %arg4[%c0_4, %c0_5] : memref<1x256xf32, #tpu.memory_space<vmem>>, vector<1x256xf32>
    %5 = arith.mulf %0, %3 : vector<1x256xf32>
    %6 = arith.subf %4, %5 : vector<1x256xf32>
    %c0_6 = arith.constant 0 : index
    %c0_7 = arith.constant 0 : index
    %7 = vector.load %arg1[%c0_6, %c0_7] : memref<256x256xf32, #tpu.memory_space<vmem>>, vector<256x256xf32>
    %8 = vector.broadcast %3 : vector<1x256xf32> to vector<256x256xf32>
    %9 = arith.mulf %7, %8 : vector<256x256xf32>
    %10 = vector.broadcast %6 : vector<1x256xf32> to vector<256x256xf32>
    %11 = arith.addf %9, %10 : vector<256x256xf32>
    %cst = arith.constant 0.000000e+00 : f32
    %12 = vector.broadcast %cst : f32 to vector<256x256xf32>
    %13 = arith.cmpf ogt, %11, %12 : vector<256x256xf32>
    %cst_8 = arith.constant 2.000000e-01 : f32
    %14 = vector.broadcast %cst_8 : f32 to vector<256x256xf32>
    %15 = arith.mulf %14, %11 : vector<256x256xf32>
    %16 = arith.select %13, %11, %15 : vector<256x256xi1>, vector<256x256xf32>
    %c0_9 = arith.constant 0 : index
    %c0_10 = arith.constant 0 : index
    %17 = vector.load %arg5[%c0_9, %c0_10] : memref<256x256xf32, #tpu.memory_space<vmem>>, vector<256x256xf32>
    tpu.vector_store %arg5[%c0_9, %c0_10], %16 {strides = array<i32>} : memref<256x256xf32, #tpu.memory_space<vmem>>, vector<256x256xf32>,
    return
  }
  func.func @transform_0(%arg0: i32) -> (i32, i32) {
    %c0_i32 = arith.constant 0 : i32
    %c0_i32_0 = arith.constant 0 : i32
    return %arg0, %c0_i32 : i32, i32
  }
  func.func @transform_1(%arg0: i32) -> (i32, i32) {
    %c0_i32 = arith.constant 0 : i32
    %c0_i32_0 = arith.constant 0 : i32
    %c0_i32_1 = arith.constant 0 : i32
    return %c0_i32, %c0_i32_0 : i32, i32
  }
  func.func @transform_2(%arg0: i32) -> (i32, i32) {
    %c0_i32 = arith.constant 0 : i32
    %c0_i32_0 = arith.constant 0 : i32
    %c0_i32_1 = arith.constant 0 : i32
    return %c0_i32, %c0_i32_0 : i32, i32
  }
  func.func @transform_3(%arg0: i32) -> (i32, i32) {
    %c0_i32 = arith.constant 0 : i32
    %c0_i32_0 = arith.constant 0 : i32
    %c0_i32_1 = arith.constant 0 : i32
    return %c0_i32, %c0_i32_0 : i32, i32
  }
  func.func @transform_4(%arg0: i32) -> (i32, i32) {
    %c0_i32 = arith.constant 0 : i32
    %c0_i32_0 = arith.constant 0 : i32
    return %arg0, %c0_i32 : i32, i32
  }
}

</mosaic_0001>

<llo_original>
// kernel: linear_block_forward.3
$region0: #{linear_block_forward.3}
  #allocation0 [shape = 'u32[]', space=smem, size = 0x4, offset = 0x4, fixed_abs, tag = 'smem constant byte address 0x4 - core index']
  #allocation1 [shape = 'u32[144,128]{1,0:T(1,128)}', space=vmem, size = 0x12000, scoped, tag = 'internal scratch']
  %s0 = inlined_call_operand.vmem [shape: f32[512,256], index: 0, kind: input, shape index: {}]
  %s1 = inlined_call_operand.vmem [shape: f32[2,256], index: 1, kind: input, shape index: {}]
  %s2 = inlined_call_operand.vmem [shape: f32[1,256], index: 2, kind: input, shape index: {}]
  %s3 = inlined_call_operand.vmem [shape: f32[1,256], index: 3, kind: input, shape index: {}]
  %s4 = inlined_call_operand.hbm [shape: f32[512,256], index: 4, kind: output, shape index: {}]
  %s5 = sld [smem:[#allocation0]]
  $region49: #{linear_block_forward.3} parent=0
    _
  %s7 = ssub.s32 1, %s5
  %s8 = scalar_select 0, %s7, %s5
  $region1: #{linear_block_forward.3} parent=0
    #allocation2 [shape = 'u8[524288]{0}', space=vmem, size = 0x80000, scoped, tag = 'output window, operand 0']
    #allocation3 [shape = 's32[2]{0}', space=sflag, size = 0x8, scoped, tag = 'scoped memory for linear_block_forward.3']
    %9 = vsyncpa [#allocation3], 0
    %s10 = scalar_lea.sflag [#allocation3], 1
    %11 = vsyncpa %s10, 0
    loop: start=0, step=1, limit=4
    $region2: #{linear_block_forward.3} parent=1 // loop_pre_header
      _
    $region3: #{linear_block_forward.3} parent=1 // loop_header
      %s13 = sphi 0, %s17
      %p14 = scmp.ge.s32.totalorder %s13, 4
      %s23 = sphi 0, %s25
      %s26 = sphi 0, %s23
      %s27 = sphi 0, %s26
      %s43 = sphi 0, %s27
      %s47 = sphi 0, %s47
      %s49 = sphi 0, %s47
      %s50 = sphi 0, %s49
      %s64 = sphi 0, %s50
      %s68 = sphi 0, %s68
      %s70 = sphi 0, %s68
      %s71 = sphi 0, %s70
      %s85 = sphi 0, %s71
      %s89 = sphi 0, %s89
      %s91 = sphi 0, %s89
      %s92 = sphi 0, %s91
      %s106 = sphi 0, %s92
      %s112 = sphi 0, %s114
      %s115 = sphi 0, %s112
      %s116 = sphi 0, %s115
      %s132 = sphi 0, %s116
    $region4: #{linear_block_forward.3} parent=1 // loop_header_branch
      %16 = sbr.rel (%p14) target = $region8
    $region5: #{linear_block_forward.3} parent=1 // loop_body
      %s18 = ssub.s32 %s13, 1
      %s19 = ssub.s32 %s13, 2
      %s20 = sadd.s32 %s13, 1
      %s21 = ssub.s32 %s13, %s20
      %p22 = scmp.eq.s32.totalorder %s21, 0
      %s24 = sadd.s32 %s23, 1
      %s25 = scalar_select %p22, %s23, %s24
      %p28 = pneg %p22
      %p29 = scmp.eq.s32.totalorder %s13, 1
      %p30 = por %p28, %p29
      %p31 = scmp.ne.s32.totalorder %s23, %s26
      %p32 = scmp.eq.s32.totalorder %s13, 0
      %p33 = por %p31, %p32
      %p34 = scmp.ne.s32.totalorder %s23, %s26
      %p35 = scmp.eq.s32.totalorder %s18, 1
      %p36 = por %p34, %p35
      %p37 = scmp.ne.s32.totalorder %s26, %s27
      %p38 = scmp.eq.s32.totalorder %s18, 0
      %p39 = por %p37, %p38
      %p40 = scmp.ne.s32.totalorder %s26, %s27
      %p41 = scmp.eq.s32.totalorder %s19, 1
      %p42 = por %p40, %p41
      %p44 = scmp.ne.s32.totalorder %s27, %s43
      %p45 = scmp.eq.s32.totalorder %s19, 0
      %p46 = por %p44, %p45
      %s48 = sadd.s32 %s47, 1
      %p51 = scmp.eq.s32.totalorder %s13, 1
      %p52 = scmp.ne.s32.totalorder %s47, %s49
      %p53 = scmp.eq.s32.totalorder %s13, 0
      %p54 = por %p52, %p53
      %p55 = scmp.ne.s32.totalorder %s47, %s49
      %p56 = scmp.eq.s32.totalorder %s18, 1
      %p57 = por %p55, %p56
      %p58 = scmp.ne.s32.totalorder %s49, %s50
      %p59 = scmp.eq.s32.totalorder %s18, 0
      %p60 = por %p58, %p59
      %p61 = scmp.ne.s32.totalorder %s49, %s50
      %p62 = scmp.eq.s32.totalorder %s19, 1
      %p63 = por %p61, %p62
      %p65 = scmp.ne.s32.totalorder %s50, %s64
      %p66 = scmp.eq.s32.totalorder %s19, 0
      %p67 = por %p65, %p66
      %s69 = sadd.s32 %s68, 1
      %p72 = scmp.eq.s32.totalorder %s13, 1
      %p73 = scmp.ne.s32.totalorder %s68, %s70
      %p74 = scmp.eq.s32.totalorder %s13, 0
      %p75 = por %p73, %p74
      %p76 = scmp.ne.s32.totalorder %s68, %s70
      %p77 = scmp.eq.s32.totalorder %s18, 1
      %p78 = por %p76, %p77
      %p79 = scmp.ne.s32.totalorder %s70, %s71
      %p80 = scmp.eq.s32.totalorder %s18, 0
      %p81 = por %p79, %p80
      %p82 = scmp.ne.s32.totalorder %s70, %s71
      %p83 = scmp.eq.s32.totalorder %s19, 1
      %p84 = por %p82, %p83
      %p86 = scmp.ne.s32.totalorder %s71, %s85
      %p87 = scmp.eq.s32.totalorder %s19, 0
      %p88 = por %p86, %p87
      %s90 = sadd.s32 %s89, 1
      %p93 = scmp.eq.s32.totalorder %s13, 1
      %p94 = scmp.ne.s32.totalorder %s89, %s91
      %p95 = scmp.eq.s32.totalorder %s13, 0
      %p96 = por %p94, %p95
      %p97 = scmp.ne.s32.totalorder %s89, %s91
      %p98 = scmp.eq.s32.totalorder %s18, 1
      %p99 = por %p97, %p98
      %p100 = scmp.ne.s32.totalorder %s91, %s92
      %p101 = scmp.eq.s32.totalorder %s18, 0
      %p102 = por %p100, %p101
      %p103 = scmp.ne.s32.totalorder %s91, %s92
      %p104 = scmp.eq.s32.totalorder %s19, 1
      %p105 = por %p103, %p104
      %p107 = scmp.ne.s32.totalorder %s92, %s106
      %p108 = scmp.eq.s32.totalorder %s19, 0
      %p109 = por %p107, %p108
      %s110 = ssub.s32 %s13, %s20
      %p111 = scmp.eq.s32.totalorder %s110, 0
      %s113 = sadd.s32 %s112, 1
      %s114 = scalar_select %p111, %s112, %s113
      %p117 = pneg %p111
      %p118 = scmp.eq.s32.totalorder %s13, 1
      %p119 = por %p117, %p118
      %p120 = scmp.ne.s32.totalorder %s112, %s115
      %p121 = scmp.eq.s32.totalorder %s13, 0
      %p122 = por %p120, %p121
      %p123 = scmp.ne.s32.totalorder %s112, %s115
      %p124 = scmp.eq.s32.totalorder %s18, 1
      %p125 = por %p123, %p124
      %p126 = scmp.ne.s32.totalorder %s115, %s116
      %p127 = scmp.eq.s32.totalorder %s18, 0
      %p128 = por %p126, %p127
      %p129 = scmp.ne.s32.totalorder %s115, %s116
      %p130 = scmp.eq.s32.totalorder %s19, 1
      %p131 = por %p129, %p130
      %p133 = scmp.ne.s32.totalorder %s116, %s132
      %p134 = scmp.eq.s32.totalorder %s19, 0
      %p135 = por %p133, %p134
      %p136 = scmp.le.s32.totalorder 1, %s13
      %p137 = scmp.lt.s32.totalorder %s13, 3
      %p138 = pnand %p136, %p137
      %p139 = pneg %p138
      // Predicated region
      $region9: #{linear_block_forward.3} parent=5 // pred_check
        _
      $region10: #{linear_block_forward.3} parent=5 // pred_check_branch
        %141 = sbr.rel (%p138) target = $region12
      $region11: #{linear_block_forward.3} parent=5 // pred_region
        %s142 = ssub.s32 %s13, 1
        // Predicated region
        $region13: #{linear_block_forward.3} parent=11 // pred_check
          %p143 = pneg %p60
        $region14: #{linear_block_forward.3} parent=11 // pred_check_branch
          %145 = sbr.rel (%p143) target = $region16
        $region15: #{linear_block_forward.3} parent=11 // pred_region
          _
        $region16: #{linear_block_forward.3} parent=11 // pred_fallthru
          _
        // Predicated region
        $region17: #{linear_block_forward.3} parent=11 // pred_check
          %p146 = pneg %p81
        $region18: #{linear_block_forward.3} parent=11 // pred_check_branch
          %148 = sbr.rel (%p146) target = $region20
        $region19: #{linear_block_forward.3} parent=11 // pred_region
          _
        $region20: #{linear_block_forward.3} parent=11 // pred_fallthru
          _
        // Predicated region
        $region21: #{linear_block_forward.3} parent=11 // pred_check
          %p149 = pneg %p102
        $region22: #{linear_block_forward.3} parent=11 // pred_check_branch
          %151 = sbr.rel (%p149) target = $region24
        $region23: #{linear_block_forward.3} parent=11 // pred_region
          _
        $region24: #{linear_block_forward.3} parent=11 // pred_fallthru
          _
      $region12: #{linear_block_forward.3} parent=5 // pred_fallthru
        _
      %p152 = scmp.lt.s32.totalorder %s13, 2
      // Predicated region
      $region25: #{linear_block_forward.3} parent=5 // pred_check
        %p153 = pneg %p152
      $region26: #{linear_block_forward.3} parent=5 // pred_check_branch
        %155 = sbr.rel (%p153) target = $region28
      $region27: #{linear_block_forward.3} parent=5 // pred_region
        // Predicated region
        $region29: #{linear_block_forward.3} parent=27 // pred_check
          %p156 = pneg %p33
        $region30: #{linear_block_forward.3} parent=27 // pred_check_branch
          %158 = sbr.rel (%p156) target = $region32
        $region31: #{linear_block_forward.3} parent=27 // pred_region
          %s159 = smul.u32 32, %s13
          %p160 = scmp.lt.s32.totalorder %s159, 63
          %s161 = scalar_select %p160, %s159, 63
          %s162 = smul.addr %s161, 2
          %s163 = smul.addr %s162, 8
          %s164 = scalar_lea.vmem %s0, %s163
          %s165 = smul.u32 32, %s13
        $region32: #{linear_block_forward.3} parent=27 // pred_fallthru
          _
      $region28: #{linear_block_forward.3} parent=5 // pred_fallthru
        _
      %p166 = scmp.le.s32.totalorder 1, %s13
      %p167 = scmp.lt.s32.totalorder %s13, 3
      %p168 = pnand %p166, %p167
      %p169 = pneg %p168
      // Predicated region
      $region33: #{linear_block_forward.3} parent=5 // pred_check
        _
      $region34: #{linear_block_forward.3} parent=5 // pred_check_branch
        %171 = sbr.rel (%p168) target = $region36
      $region35: #{linear_block_forward.3} parent=5 // pred_region
        %s172 = ssub.s32 %s13, 1
        %s173 = smul.u32 32, %s18
        %p174 = scmp.lt.s32.totalorder %s173, 63
        %s175 = scalar_select %p174, %s173, 63
        %s176 = smul.addr %s175, 2
        %s177 = smul.addr %s176, 8
        %s178 = scalar_lea.vmem %s0, %s177
        %p179 = pneg %p39
        %p180 = pneg %p36
        %p181 = pneg %p60
        %p182 = pneg %p57
        %p183 = pneg %p81
        %p184 = pneg %p78
        %p185 = pneg %p102
        %p186 = pneg %p99
        %p187 = pneg %p128
        %p188 = pneg %p125
        %s189 = sand.u32 %s115, 1
        %s190 = scalar_lea.sflag [#allocation3], %s189
        %s191 = sand.u32 %s115, 1
        %s192 = smul.addr %s191, 512
        %s193 = scalar_lea.vmem [#allocation2], %s192
        %s194 = smul.u32 32, %s18
        %p195 = scmp.lt.s32.totalorder %s194, 63
        %s196 = scalar_select %p195, %s194, 63
        %s197 = smul.addr %s196, 2
        %s198 = smul.addr %s197, 8
        %s199 = scalar_lea.vmem %s0, %s198
        %s200 = smul.u32 32, %s18
        %s201 = smul.u32 32, %s18
        %v202 = vld [vmem:[%s1] ss:$2 sm:$0x3]
        %s203 = scalar_lea.vmem %s1, 1
        %v204 = vld [vmem:[%s203] ss:$2 sm:$0x3]
        %v205 = vld [vmem:[%s2] sm:$0x3]
        %v206 = vmul.f32 %v205, %v204
        %v207 = vld [vmem:[%s3] sm:$0x3]
        %v208 = vmul.f32 %v202, %v206
        %v209 = vsub.f32 %v207, %v208
        %v210 = vld [vmem:[%s199] sm:$0xff]
        %v211 = vld [vmem:[%s199 + $0x8] sm:$0xff]
        %v212 = vld [vmem:[%s199 + $0x10] sm:$0xff]
        %v213 = vld [vmem:[%s199 + $0x18] sm:$0xff]
        %v214 = vld [vmem:[%s199 + $0x20] sm:$0xff]
        %v215 = vld [vmem:[%s199 + $0x28] sm:$0xff]
        %v216 = vld [vmem:[%s199 + $0x30] sm:$0xff]
        %v217 = vld [vmem:[%s199 + $0x38] sm:$0xff]
        %v218 = vld [vmem:[%s199 + $0x40] sm:$0xff]
        %v219 = vld [vmem:[%s199 + $0x48] sm:$0xff]
        %v220 = vld [vmem:[%s199 + $0x50] sm:$0xff]
        %v221 = vld [vmem:[%s199 + $0x58] sm:$0xff]
        %v222 = vld [vmem:[%s199 + $0x60] sm:$0xff]
        %v223 = vld [vmem:[%s199 + $0x68] sm:$0xff]
        %v224 = vld [vmem:[%s199 + $0x70] sm:$0xff]
        %v225 = vld [vmem:[%s199 + $0x78] sm:$0xff]
        %v226 = vld [vmem:[%s199 + $0x80] sm:$0xff]
        %v227 = vld [vmem:[%s199 + $0x88] sm:$0xff]
        %v228 = vld [vmem:[%s199 + $0x90] sm:$0xff]
        %v229 = vld [vmem:[%s199 + $0x98] sm:$0xff]
        %v230 = vld [vmem:[%s199 + $0xa0] sm:$0xff]
        %v231 = vld [vmem:[%s199 + $0xa8] sm:$0xff]
        %v232 = vld [vmem:[%s199 + $0xb0] sm:$0xff]
        %v233 = vld [vmem:[%s199 + $0xb8] sm:$0xff]
        %v234 = vld [vmem:[%s199 + $0xc0] sm:$0xff]
        %v235 = vld [vmem:[%s199 + $0xc8] sm:$0xff]
        %v236 = vld [vmem:[%s199 + $0xd0] sm:$0xff]
        %v237 = vld [vmem:[%s199 + $0xd8] sm:$0xff]
        %v238 = vld [vmem:[%s199 + $0xe0] sm:$0xff]
        %v239 = vld [vmem:[%s199 + $0xe8] sm:$0xff]
        %v240 = vld [vmem:[%s199 + $0xf0] sm:$0xff]
        %v241 = vld [vmem:[%s199 + $0xf8] sm:$0xff]
        %v242 = vld [vmem:[%s199 + $0x100] sm:$0xff]
        %v243 = vld [vmem:[%s199 + $0x108] sm:$0xff]
        %v244 = vld [vmem:[%s199 + $0x110] sm:$0xff]
        %v245 = vld [vmem:[%s199 + $0x118] sm:$0xff]
        %v246 = vld [vmem:[%s199 + $0x120] sm:$0xff]
        %v247 = vld [vmem:[%s199 + $0x128] sm:$0xff]
        %v248 = vld [vmem:[%s199 + $0x130] sm:$0xff]
        %v249 = vld [vmem:[%s199 + $0x138] sm:$0xff]
        %v250 = vld [vmem:[%s199 + $0x140] sm:$0xff]
        %v251 = vld [vmem:[%s199 + $0x148] sm:$0xff]
        %v252 = vld [vmem:[%s199 + $0x150] sm:$0xff]
        %v253 = vld [vmem:[%s199 + $0x158] sm:$0xff]
        %v254 = vld [vmem:[%s199 + $0x160] sm:$0xff]
        %v255 = vld [vmem:[%s199 + $0x168] sm:$0xff]
        %v256 = vld [vmem:[%s199 + $0x170] sm:$0xff]
        %v257 = vld [vmem:[%s199 + $0x178] sm:$0xff]
        %v258 = vld [vmem:[%s199 + $0x180] sm:$0xff]
        %v259 = vld [vmem:[%s199 + $0x188] sm:$0xff]
        %v260 = vld [vmem:[%s199 + $0x190] sm:$0xff]
        %v261 = vld [vmem:[%s199 + $0x198] sm:$0xff]
        %v262 = vld [vmem:[%s199 + $0x1a0] sm:$0xff]
        %v263 = vld [vmem:[%s199 + $0x1a8] sm:$0xff]
        %v264 = vld [vmem:[%s199 + $0x1b0] sm:$0xff]
        %v265 = vld [vmem:[%s199 + $0x1b8] sm:$0xff]
        %v266 = vld [vmem:[%s199 + $0x1c0] sm:$0xff]
        %v267 = vld [vmem:[%s199 + $0x1c8] sm:$0xff]
        %v268 = vld [vmem:[%s199 + $0x1d0] sm:$0xff]
        %v269 = vld [vmem:[%s199 + $0x1d8] sm:$0xff]
        %v270 = vld [vmem:[%s199 + $0x1e0] sm:$0xff]
        %v271 = vld [vmem:[%s199 + $0x1e8] sm:$0xff]
        %v272 = vld [vmem:[%s199 + $0x1f0] sm:$0xff]
        %v273 = vld [vmem:[%s199 + $0x1f8] sm:$0xff]
        %v275 = vlaneseq
        %v276 = vshrl.u32 %v275, 7
        %v277 = vsub.s32 0, %v276
        %v278 = vrot.slane %v206, %v277
        %v279 = vlaneseq
        %v280 = vshrl.u32 %v279, 7
        %v281 = vsub.s32 1, %v280
        %v282 = vrot.slane %v206, %v281
        %v285 = vmul.f32 %v210, %v278
        %v286 = vmul.f32 %v211, %v282
        %v287 = vmul.f32 %v212, %v278
        %v288 = vmul.f32 %v213, %v282
        %v289 = vmul.f32 %v214, %v278
        %v290 = vmul.f32 %v215, %v282
        %v291 = vmul.f32 %v216, %v278
        %v292 = vmul.f32 %v217, %v282
        %v293 = vmul.f32 %v218, %v278
        %v294 = vmul.f32 %v219, %v282
        %v295 = vmul.f32 %v220, %v278
        %v296 = vmul.f32 %v221, %v282
        %v297 = vmul.f32 %v222, %v278
        %v298 = vmul.f32 %v223, %v282
        %v299 = vmul.f32 %v224, %v278
        %v300 = vmul.f32 %v225, %v282
        %v301 = vmul.f32 %v226, %v278
        %v302 = vmul.f32 %v227, %v282
        %v303 = vmul.f32 %v228, %v278
        %v304 = vmul.f32 %v229, %v282
        %v305 = vmul.f32 %v230, %v278
        %v306 = vmul.f32 %v231, %v282
        %v307 = vmul.f32 %v232, %v278
        %v308 = vmul.f32 %v233, %v282
        %v309 = vmul.f32 %v234, %v278
        %v310 = vmul.f32 %v235, %v282
        %v311 = vmul.f32 %v236, %v278
        %v312 = vmul.f32 %v237, %v282
        %v313 = vmul.f32 %v238, %v278
        %v314 = vmul.f32 %v239, %v282
        %v315 = vmul.f32 %v240, %v278
        %v316 = vmul.f32 %v241, %v282
        %v317 = vmul.f32 %v242, %v278
        %v318 = vmul.f32 %v243, %v282
        %v319 = vmul.f32 %v244, %v278
        %v320 = vmul.f32 %v245, %v282
        %v321 = vmul.f32 %v246, %v278
        %v322 = vmul.f32 %v247, %v282
        %v323 = vmul.f32 %v248, %v278
        %v324 = vmul.f32 %v249, %v282
        %v325 = vmul.f32 %v250, %v278
        %v326 = vmul.f32 %v251, %v282
        %v327 = vmul.f32 %v252, %v278
        %v328 = vmul.f32 %v253, %v282
        %v329 = vmul.f32 %v254, %v278
        %v330 = vmul.f32 %v255, %v282
        %v331 = vmul.f32 %v256, %v278
        %v332 = vmul.f32 %v257, %v282
        %v333 = vmul.f32 %v258, %v278
        %v334 = vmul.f32 %v259, %v282
        %v335 = vmul.f32 %v260, %v278
        %v336 = vmul.f32 %v261, %v282
        %v337 = vmul.f32 %v262, %v278
        %v338 = vmul.f32 %v263, %v282
        %v339 = vmul.f32 %v264, %v278
        %v340 = vmul.f32 %v265, %v282
        %v341 = vmul.f32 %v266, %v278
        %v342 = vmul.f32 %v267, %v282
        %v343 = vmul.f32 %v268, %v278
        %v344 = vmul.f32 %v269, %v282
        %v345 = vmul.f32 %v270, %v278
        %v346 = vmul.f32 %v271, %v282
        %v347 = vmul.f32 %v272, %v278
        %v348 = vmul.f32 %v273, %v282
        %v350 = vlaneseq
        %v351 = vshrl.u32 %v350, 7
        %v352 = vsub.s32 0, %v351
        %v353 = vrot.slane %v209, %v352
        %v354 = vlaneseq
        %v355 = vshrl.u32 %v354, 7
        %v356 = vsub.s32 1, %v355
        %v357 = vrot.slane %v209, %v356
        %v360 = vadd.f32 %v285, %v353
        %v361 = vadd.f32 %v286, %v357
        %v362 = vadd.f32 %v287, %v353
        %v363 = vadd.f32 %v288, %v357
        %v364 = vadd.f32 %v289, %v353
        %v365 = vadd.f32 %v290, %v357
        %v366 = vadd.f32 %v291, %v353
        %v367 = vadd.f32 %v292, %v357
        %v368 = vadd.f32 %v293, %v353
        %v369 = vadd.f32 %v294, %v357
        %v370 = vadd.f32 %v295, %v353
        %v371 = vadd.f32 %v296, %v357
        %v372 = vadd.f32 %v297, %v353
        %v373 = vadd.f32 %v298, %v357
        %v374 = vadd.f32 %v299, %v353
        %v375 = vadd.f32 %v300, %v357
        %v376 = vadd.f32 %v301, %v353
        %v377 = vadd.f32 %v302, %v357
        %v378 = vadd.f32 %v303, %v353
        %v379 = vadd.f32 %v304, %v357
        %v380 = vadd.f32 %v305, %v353
        %v381 = vadd.f32 %v306, %v357
        %v382 = vadd.f32 %v307, %v353
        %v383 = vadd.f32 %v308, %v357
        %v384 = vadd.f32 %v309, %v353
        %v385 = vadd.f32 %v310, %v357
        %v386 = vadd.f32 %v311, %v353
        %v387 = vadd.f32 %v312, %v357
        %v388 = vadd.f32 %v313, %v353
        %v389 = vadd.f32 %v314, %v357
        %v390 = vadd.f32 %v315, %v353
        %v391 = vadd.f32 %v316, %v357
        %v392 = vadd.f32 %v317, %v353
        %v393 = vadd.f32 %v318, %v357
        %v394 = vadd.f32 %v319, %v353
        %v395 = vadd.f32 %v320, %v357
        %v396 = vadd.f32 %v321, %v353
        %v397 = vadd.f32 %v322, %v357
        %v398 = vadd.f32 %v323, %v353
        %v399 = vadd.f32 %v324, %v357
        %v400 = vadd.f32 %v325, %v353
        %v401 = vadd.f32 %v326, %v357
        %v402 = vadd.f32 %v327, %v353
        %v403 = vadd.f32 %v328, %v357
        %v404 = vadd.f32 %v329, %v353
        %v405 = vadd.f32 %v330, %v357
        %v406 = vadd.f32 %v331, %v353
        %v407 = vadd.f32 %v332, %v357
        %v408 = vadd.f32 %v333, %v353
        %v409 = vadd.f32 %v334, %v357
        %v410 = vadd.f32 %v335, %v353
        %v411 = vadd.f32 %v336, %v357
        %v412 = vadd.f32 %v337, %v353
        %v413 = vadd.f32 %v338, %v357
        %v414 = vadd.f32 %v339, %v353
        %v415 = vadd.f32 %v340, %v357
        %v416 = vadd.f32 %v341, %v353
        %v417 = vadd.f32 %v342, %v357
        %v418 = vadd.f32 %v343, %v353
        %v419 = vadd.f32 %v344, %v357
        %v420 = vadd.f32 %v345, %v353
        %v421 = vadd.f32 %v346, %v357
        %v422 = vadd.f32 %v347, %v353
        %v423 = vadd.f32 %v348, %v357
        %vm424 = vcmp.gt.f32.partialorder %v360, 0.0
        %vm425 = vcmp.gt.f32.partialorder %v361, 0.0
        %vm426 = vcmp.gt.f32.partialorder %v362, 0.0
        %vm427 = vcmp.gt.f32.partialorder %v363, 0.0
        %vm428 = vcmp.gt.f32.partialorder %v364, 0.0
        %vm429 = vcmp.gt.f32.partialorder %v365, 0.0
        %vm430 = vcmp.gt.f32.partialorder %v366, 0.0
        %vm431 = vcmp.gt.f32.partialorder %v367, 0.0
        %vm432 = vcmp.gt.f32.partialorder %v368, 0.0
        %vm433 = vcmp.gt.f32.partialorder %v369, 0.0
        %vm434 = vcmp.gt.f32.partialorder %v370, 0.0
        %vm435 = vcmp.gt.f32.partialorder %v371, 0.0
        %vm436 = vcmp.gt.f32.partialorder %v372, 0.0
        %vm437 = vcmp.gt.f32.partialorder %v373, 0.0
        %vm438 = vcmp.gt.f32.partialorder %v374, 0.0
        %vm439 = vcmp.gt.f32.partialorder %v375, 0.0
        %vm440 = vcmp.gt.f32.partialorder %v376, 0.0
        %vm441 = vcmp.gt.f32.partialorder %v377, 0.0
        %vm442 = vcmp.gt.f32.partialorder %v378, 0.0
        %vm443 = vcmp.gt.f32.partialorder %v379, 0.0
        %vm444 = vcmp.gt.f32.partialorder %v380, 0.0
        %vm445 = vcmp.gt.f32.partialorder %v381, 0.0
        %vm446 = vcmp.gt.f32.partialorder %v382, 0.0
        %vm447 = vcmp.gt.f32.partialorder %v383, 0.0
        %vm448 = vcmp.gt.f32.partialorder %v384, 0.0
        %vm449 = vcmp.gt.f32.partialorder %v385, 0.0
        %vm450 = vcmp.gt.f32.partialorder %v386, 0.0
        %vm451 = vcmp.gt.f32.partialorder %v387, 0.0
        %vm452 = vcmp.gt.f32.partialorder %v388, 0.0
        %vm453 = vcmp.gt.f32.partialorder %v389, 0.0
        %vm454 = vcmp.gt.f32.partialorder %v390, 0.0
        %vm455 = vcmp.gt.f32.partialorder %v391, 0.0
        %vm456 = vcmp.gt.f32.partialorder %v392, 0.0
        %vm457 = vcmp.gt.f32.partialorder %v393, 0.0
        %vm458 = vcmp.gt.f32.partialorder %v394, 0.0
        %vm459 = vcmp.gt.f32.partialorder %v395, 0.0
        %vm460 = vcmp.gt.f32.partialorder %v396, 0.0
        %vm461 = vcmp.gt.f32.partialorder %v397, 0.0
        %vm462 = vcmp.gt.f32.partialorder %v398, 0.0
        %vm463 = vcmp.gt.f32.partialorder %v399, 0.0
        %vm464 = vcmp.gt.f32.partialorder %v400, 0.0
        %vm465 = vcmp.gt.f32.partialorder %v401, 0.0
        %vm466 = vcmp.gt.f32.partialorder %v402, 0.0
        %vm467 = vcmp.gt.f32.partialorder %v403, 0.0
        %vm468 = vcmp.gt.f32.partialorder %v404, 0.0
        %vm469 = vcmp.gt.f32.partialorder %v405, 0.0
        %vm470 = vcmp.gt.f32.partialorder %v406, 0.0
        %vm471 = vcmp.gt.f32.partialorder %v407, 0.0
        %vm472 = vcmp.gt.f32.partialorder %v408, 0.0
        %vm473 = vcmp.gt.f32.partialorder %v409, 0.0
        %vm474 = vcmp.gt.f32.partialorder %v410, 0.0
        %vm475 = vcmp.gt.f32.partialorder %v411, 0.0
        %vm476 = vcmp.gt.f32.partialorder %v412, 0.0
        %vm477 = vcmp.gt.f32.partialorder %v413, 0.0
        %vm478 = vcmp.gt.f32.partialorder %v414, 0.0
        %vm479 = vcmp.gt.f32.partialorder %v415, 0.0
        %vm480 = vcmp.gt.f32.partialorder %v416, 0.0
        %vm481 = vcmp.gt.f32.partialorder %v417, 0.0
        %vm482 = vcmp.gt.f32.partialorder %v418, 0.0
        %vm483 = vcmp.gt.f32.partialorder %v419, 0.0
        %vm484 = vcmp.gt.f32.partialorder %v420, 0.0
        %vm485 = vcmp.gt.f32.partialorder %v421, 0.0
        %vm486 = vcmp.gt.f32.partialorder %v422, 0.0
        %vm487 = vcmp.gt.f32.partialorder %v423, 0.0
        %v488 = vmul.f32 %v360, 0.2
        %v489 = vmul.f32 %v361, 0.2
        %v490 = vmul.f32 %v362, 0.2
        %v491 = vmul.f32 %v363, 0.2
        %v492 = vmul.f32 %v364, 0.2
        %v493 = vmul.f32 %v365, 0.2
        %v494 = vmul.f32 %v366, 0.2
        %v495 = vmul.f32 %v367, 0.2
        %v496 = vmul.f32 %v368, 0.2
        %v497 = vmul.f32 %v369, 0.2
        %v498 = vmul.f32 %v370, 0.2
        %v499 = vmul.f32 %v371, 0.2
        %v500 = vmul.f32 %v372, 0.2
        %v501 = vmul.f32 %v373, 0.2
        %v502 = vmul.f32 %v374, 0.2
        %v503 = vmul.f32 %v375, 0.2
        %v504 = vmul.f32 %v376, 0.2
        %v505 = vmul.f32 %v377, 0.2
        %v506 = vmul.f32 %v378, 0.2
        %v507 = vmul.f32 %v379, 0.2
        %v508 = vmul.f32 %v380, 0.2
        %v509 = vmul.f32 %v381, 0.2
        %v510 = vmul.f32 %v382, 0.2
        %v511 = vmul.f32 %v383, 0.2
        %v512 = vmul.f32 %v384, 0.2
        %v513 = vmul.f32 %v385, 0.2
        %v514 = vmul.f32 %v386, 0.2
        %v515 = vmul.f32 %v387, 0.2
        %v516 = vmul.f32 %v388, 0.2
        %v517 = vmul.f32 %v389, 0.2
        %v518 = vmul.f32 %v390, 0.2
        %v519 = vmul.f32 %v391, 0.2
        %v520 = vmul.f32 %v392, 0.2
        %v521 = vmul.f32 %v393, 0.2
        %v522 = vmul.f32 %v394, 0.2
        %v523 = vmul.f32 %v395, 0.2
        %v524 = vmul.f32 %v396, 0.2
        %v525 = vmul.f32 %v397, 0.2
        %v526 = vmul.f32 %v398, 0.2
        %v527 = vmul.f32 %v399, 0.2
        %v528 = vmul.f32 %v400, 0.2
        %v529 = vmul.f32 %v401, 0.2
        %v530 = vmul.f32 %v402, 0.2
        %v531 = vmul.f32 %v403, 0.2
        %v532 = vmul.f32 %v404, 0.2
        %v533 = vmul.f32 %v405, 0.2
        %v534 = vmul.f32 %v406, 0.2
        %v535 = vmul.f32 %v407, 0.2
        %v536 = vmul.f32 %v408, 0.2
        %v537 = vmul.f32 %v409, 0.2
        %v538 = vmul.f32 %v410, 0.2
        %v539 = vmul.f32 %v411, 0.2
        %v540 = vmul.f32 %v412, 0.2
        %v541 = vmul.f32 %v413, 0.2
        %v542 = vmul.f32 %v414, 0.2
        %v543 = vmul.f32 %v415, 0.2
        %v544 = vmul.f32 %v416, 0.2
        %v545 = vmul.f32 %v417, 0.2
        %v546 = vmul.f32 %v418, 0.2
        %v547 = vmul.f32 %v419, 0.2
        %v548 = vmul.f32 %v420, 0.2
        %v549 = vmul.f32 %v421, 0.2
        %v550 = vmul.f32 %v422, 0.2
        %v551 = vmul.f32 %v423, 0.2
        %v552 = vsel %vm424, %v360, %v488
        %v553 = vsel %vm425, %v361, %v489
        %v554 = vsel %vm426, %v362, %v490
        %v555 = vsel %vm427, %v363, %v491
        %v556 = vsel %vm428, %v364, %v492
        %v557 = vsel %vm429, %v365, %v493
        %v558 = vsel %vm430, %v366, %v494
        %v559 = vsel %vm431, %v367, %v495
        %v560 = vsel %vm432, %v368, %v496
        %v561 = vsel %vm433, %v369, %v497
        %v562 = vsel %vm434, %v370, %v498
        %v563 = vsel %vm435, %v371, %v499
        %v564 = vsel %vm436, %v372, %v500
        %v565 = vsel %vm437, %v373, %v501
        %v566 = vsel %vm438, %v374, %v502
        %v567 = vsel %vm439, %v375, %v503
        %v568 = vsel %vm440, %v376, %v504
        %v569 = vsel %vm441, %v377, %v505
        %v570 = vsel %vm442, %v378, %v506
        %v571 = vsel %vm443, %v379, %v507
        %v572 = vsel %vm444, %v380, %v508
        %v573 = vsel %vm445, %v381, %v509
        %v574 = vsel %vm446, %v382, %v510
        %v575 = vsel %vm447, %v383, %v511
        %v576 = vsel %vm448, %v384, %v512
        %v577 = vsel %vm449, %v385, %v513
        %v578 = vsel %vm450, %v386, %v514
        %v579 = vsel %vm451, %v387, %v515
        %v580 = vsel %vm452, %v388, %v516
        %v581 = vsel %vm453, %v389, %v517
        %v582 = vsel %vm454, %v390, %v518
        %v583 = vsel %vm455, %v391, %v519
        %v584 = vsel %vm456, %v392, %v520
        %v585 = vsel %vm457, %v393, %v521
        %v586 = vsel %vm458, %v394, %v522
        %v587 = vsel %vm459, %v395, %v523
        %v588 = vsel %vm460, %v396, %v524
        %v589 = vsel %vm461, %v397, %v525
        %v590 = vsel %vm462, %v398, %v526
        %v591 = vsel %vm463, %v399, %v527
        %v592 = vsel %vm464, %v400, %v528
        %v593 = vsel %vm465, %v401, %v529
        %v594 = vsel %vm466, %v402, %v530
        %v595 = vsel %vm467, %v403, %v531
        %v596 = vsel %vm468, %v404, %v532
        %v597 = vsel %vm469, %v405, %v533
        %v598 = vsel %vm470, %v406, %v534
        %v599 = vsel %vm471, %v407, %v535
        %v600 = vsel %vm472, %v408, %v536
        %v601 = vsel %vm473, %v409, %v537
        %v602 = vsel %vm474, %v410, %v538
        %v603 = vsel %vm475, %v411, %v539
        %v604 = vsel %vm476, %v412, %v540
        %v605 = vsel %vm477, %v413, %v541
        %v606 = vsel %vm478, %v414, %v542
        %v607 = vsel %vm479, %v415, %v543
        %v608 = vsel %vm480, %v416, %v544
        %v609 = vsel %vm481, %v417, %v545
        %v610 = vsel %vm482, %v418, %v546
        %v611 = vsel %vm483, %v419, %v547
        %v612 = vsel %vm484, %v420, %v548
        %v613 = vsel %vm485, %v421, %v549
        %v614 = vsel %vm486, %v422, %v550
        %v615 = vsel %vm487, %v423, %v551
        %616 = vst [vmem:[%s193] sm:$0xff] %v552
        %617 = vst [vmem:[%s193 + $0x8] sm:$0xff] %v553
        %618 = vst [vmem:[%s193 + $0x10] sm:$0xff] %v554
        %619 = vst [vmem:[%s193 + $0x18] sm:$0xff] %v555
        %620 = vst [vmem:[%s193 + $0x20] sm:$0xff] %v556
        %621 = vst [vmem:[%s193 + $0x28] sm:$0xff] %v557
        %622 = vst [vmem:[%s193 + $0x30] sm:$0xff] %v558
        %623 = vst [vmem:[%s193 + $0x38] sm:$0xff] %v559
        %624 = vst [vmem:[%s193 + $0x40] sm:$0xff] %v560
        %625 = vst [vmem:[%s193 + $0x48] sm:$0xff] %v561
        %626 = vst [vmem:[%s193 + $0x50] sm:$0xff] %v562
        %627 = vst [vmem:[%s193 + $0x58] sm:$0xff] %v563
        %628 = vst [vmem:[%s193 + $0x60] sm:$0xff] %v564
        %629 = vst [vmem:[%s193 + $0x68] sm:$0xff] %v565
        %630 = vst [vmem:[%s193 + $0x70] sm:$0xff] %v566
        %631 = vst [vmem:[%s193 + $0x78] sm:$0xff] %v567
        %632 = vst [vmem:[%s193 + $0x80] sm:$0xff] %v568
        %633 = vst [vmem:[%s193 + $0x88] sm:$0xff] %v569
        %634 = vst [vmem:[%s193 + $0x90] sm:$0xff] %v570
        %635 = vst [vmem:[%s193 + $0x98] sm:$0xff] %v571
        %636 = vst [vmem:[%s193 + $0xa0] sm:$0xff] %v572
        %637 = vst [vmem:[%s193 + $0xa8] sm:$0xff] %v573
        %638 = vst [vmem:[%s193 + $0xb0] sm:$0xff] %v574
        %639 = vst [vmem:[%s193 + $0xb8] sm:$0xff] %v575
        %640 = vst [vmem:[%s193 + $0xc0] sm:$0xff] %v576
        %641 = vst [vmem:[%s193 + $0xc8] sm:$0xff] %v577
        %642 = vst [vmem:[%s193 + $0xd0] sm:$0xff] %v578
        %643 = vst [vmem:[%s193 + $0xd8] sm:$0xff] %v579
        %644 = vst [vmem:[%s193 + $0xe0] sm:$0xff] %v580
        %645 = vst [vmem:[%s193 + $0xe8] sm:$0xff] %v581
        %646 = vst [vmem:[%s193 + $0xf0] sm:$0xff] %v582
        %647 = vst [vmem:[%s193 + $0xf8] sm:$0xff] %v583
        %648 = vst [vmem:[%s193 + $0x100] sm:$0xff] %v584
        %649 = vst [vmem:[%s193 + $0x108] sm:$0xff] %v585
        %650 = vst [vmem:[%s193 + $0x110] sm:$0xff] %v586
        %651 = vst [vmem:[%s193 + $0x118] sm:$0xff] %v587
        %652 = vst [vmem:[%s193 + $0x120] sm:$0xff] %v588
        %653 = vst [vmem:[%s193 + $0x128] sm:$0xff] %v589
        %654 = vst [vmem:[%s193 + $0x130] sm:$0xff] %v590
        %655 = vst [vmem:[%s193 + $0x138] sm:$0xff] %v591
        %656 = vst [vmem:[%s193 + $0x140] sm:$0xff] %v592
        %657 = vst [vmem:[%s193 + $0x148] sm:$0xff] %v593
        %658 = vst [vmem:[%s193 + $0x150] sm:$0xff] %v594
        %659 = vst [vmem:[%s193 + $0x158] sm:$0xff] %v595
        %660 = vst [vmem:[%s193 + $0x160] sm:$0xff] %v596
        %661 = vst [vmem:[%s193 + $0x168] sm:$0xff] %v597
        %662 = vst [vmem:[%s193 + $0x170] sm:$0xff] %v598
        %663 = vst [vmem:[%s193 + $0x178] sm:$0xff] %v599
        %664 = vst [vmem:[%s193 + $0x180] sm:$0xff] %v600
        %665 = vst [vmem:[%s193 + $0x188] sm:$0xff] %v601
        %666 = vst [vmem:[%s193 + $0x190] sm:$0xff] %v602
        %667 = vst [vmem:[%s193 + $0x198] sm:$0xff] %v603
        %668 = vst [vmem:[%s193 + $0x1a0] sm:$0xff] %v604
        %669 = vst [vmem:[%s193 + $0x1a8] sm:$0xff] %v605
        %670 = vst [vmem:[%s193 + $0x1b0] sm:$0xff] %v606
        %671 = vst [vmem:[%s193 + $0x1b8] sm:$0xff] %v607
        %672 = vst [vmem:[%s193 + $0x1c0] sm:$0xff] %v608
        %673 = vst [vmem:[%s193 + $0x1c8] sm:$0xff] %v609
        %674 = vst [vmem:[%s193 + $0x1d0] sm:$0xff] %v610
        %675 = vst [vmem:[%s193 + $0x1d8] sm:$0xff] %v611
        %676 = vst [vmem:[%s193 + $0x1e0] sm:$0xff] %v612
        %677 = vst [vmem:[%s193 + $0x1e8] sm:$0xff] %v613
        %678 = vst [vmem:[%s193 + $0x1f0] sm:$0xff] %v614
        %679 = vst [vmem:[%s193 + $0x1f8] sm:$0xff] %v615
        %s680 = sand.u32 %s115, 1
        %s681 = scalar_lea.sflag [#allocation3], %s680
        %s682 = sand.u32 %s115, 1
        %s683 = smul.addr %s682, 512
        %s684 = scalar_lea.vmem [#allocation2], %s683
        // Predicated region
        $region37: #{linear_block_forward.3} parent=35 // pred_check
          %p685 = pneg %p125
        $region38: #{linear_block_forward.3} parent=35 // pred_check_branch
          %687 = sbr.rel (%p685) target = $region40
        $region39: #{linear_block_forward.3} parent=35 // pred_region
          %s688 = smul.u32 32, %s18
          %s690 = ssub.s32 8192, 8192
          %691 = vsyncadd %s681, %s690
          %s692 = smul.addr %s688, 2
          %s693 = smul.addr %s692, 128
          %s694 = scalar_lea.hbm %s4, %s693
          %s695 = sshll.u32 %s684, 4
          %s696 = int_to_ptr.vmem [resolvable:$true] %s695
          %701 = dma.vmem_to_hbm [thread:$0]  %s696, 8192, %s694, %s681, 256, 256, 16
        $region40: #{linear_block_forward.3} parent=35 // pred_fallthru
          _
      $region36: #{linear_block_forward.3} parent=5 // pred_fallthru
        _
      %p702 = scmp.le.s32.totalorder 2, %s13
      // Predicated region
      $region41: #{linear_block_forward.3} parent=5 // pred_check
        %p703 = pneg %p702
      $region42: #{linear_block_forward.3} parent=5 // pred_check_branch
        %705 = sbr.rel (%p703) target = $region44
      $region43: #{linear_block_forward.3} parent=5 // pred_region
        %s706 = ssub.s32 %s13, 2
        // Predicated region
        $region45: #{linear_block_forward.3} parent=43 // pred_check
          %p707 = pneg %p131
        $region46: #{linear_block_forward.3} parent=43 // pred_check_branch
          %709 = sbr.rel (%p707) target = $region48
        $region47: #{linear_block_forward.3} parent=43 // pred_region
          %s710 = sand.u32 %s116, 1
          %s711 = scalar_lea.sflag [#allocation3], %s710
          %s712 = sand.u32 %s116, 1
          %s713 = smul.addr %s712, 512
          %s714 = scalar_lea.vmem [#allocation2], %s713
          %715 = dma.done %s711, 8192
        $region48: #{linear_block_forward.3} parent=43 // pred_fallthru
          _
      $region44: #{linear_block_forward.3} parent=5 // pred_fallthru
        _
    $region6: #{linear_block_forward.3} parent=1 // loop_footer
      %s17 = sadd.s32 1, %s13
    $region7: #{linear_block_forward.3} parent=1 // loop_footer_branch
      %12 = sbr.rel target = $region3
    $region8: #{linear_block_forward.3} parent=1 // loop_exit
      _
    %716 = vsyncpa [#allocation3], 1
    %s717 = scalar_lea.sflag [#allocation3], 1
    %718 = vsyncpa %s717, 1

// kernel: linear_block_forward.2
$region0: #{linear_block_forward.2}
  #allocation0 [shape = 'u32[]', space=smem, size = 0x4, offset = 0x4, fixed_abs, tag = 'smem constant byte address 0x4 - core index']
  #allocation1 [shape = 'u32[144,128]{1,0:T(1,128)}', space=vmem, size = 0x12000, scoped, tag = 'internal scratch']
  #allocation2 [shape = 'f32[2,256]{1,0:T(2,128)}', space=vmem, size = 0x800, scoped, tag = 'scratch operand']
  %s0 = inlined_call_operand.vmem [shape: bf16[512,512], index: 0, kind: input, shape index: {}]
  %s1 = inlined_call_operand.vmem [shape: bf16[512,256], index: 1, kind: input, shape index: {}]
  %s2 = inlined_call_operand.vmem [shape: f32[1,256], index: 2, kind: input, shape index: {}]
  %s3 = inlined_call_operand.vmem [shape: f32[512,256], index: 3, kind: output, shape index: {0}]
  %s4 = inlined_call_operand.vmem [shape: f32[2,256], index: 4, kind: output, shape index: {1}]
  %5 = xla_tuple %s3, %s4
  %s6 = sld [smem:[#allocation0]]
  $region61: #{linear_block_forward.2} parent=0
    _
  %s8 = ssub.s32 1, %s6
  %s9 = scalar_select 0, %s8, %s6
  loop: start=0, step=1, limit=4
  $region2: #{linear_block_forward.2} parent=0 // loop_pre_header
    _
  $region3: #{linear_block_forward.2} parent=0 // loop_header
    %s11 = sphi 0, %s15
    %p12 = scmp.ge.s32.totalorder %s11, 4
    %s21 = sphi 0, %s23
    %s24 = sphi 0, %s21
    %s25 = sphi 0, %s24
    %s41 = sphi 0, %s25
    %s45 = sphi 0, %s45
    %s47 = sphi 0, %s45
    %s48 = sphi 0, %s47
    %s62 = sphi 0, %s48
    %s66 = sphi 0, %s66
    %s68 = sphi 0, %s66
    %s69 = sphi 0, %s68
    %s83 = sphi 0, %s69
    %s89 = sphi 0, %s91
    %s92 = sphi 0, %s89
    %s93 = sphi 0, %s92
    %s109 = sphi 0, %s93
    %s113 = sphi 0, %s113
    %s115 = sphi 0, %s113
    %s116 = sphi 0, %s115
    %s130 = sphi 0, %s116
  $region4: #{linear_block_forward.2} parent=0 // loop_header_branch
    %14 = sbr.rel (%p12) target = $region8
  $region5: #{linear_block_forward.2} parent=0 // loop_body
    %s16 = ssub.s32 %s11, 1
    %s17 = ssub.s32 %s11, 2
    %s18 = sadd.s32 %s11, 1
    %s19 = ssub.s32 %s11, %s18
    %p20 = scmp.eq.s32.totalorder %s19, 0
    %s22 = sadd.s32 %s21, 1
    %s23 = scalar_select %p20, %s21, %s22
    %p26 = pneg %p20
    %p27 = scmp.eq.s32.totalorder %s11, 1
    %p28 = por %p26, %p27
    %p29 = scmp.ne.s32.totalorder %s21, %s24
    %p30 = scmp.eq.s32.totalorder %s11, 0
    %p31 = por %p29, %p30
    %p32 = scmp.ne.s32.totalorder %s21, %s24
    %p33 = scmp.eq.s32.totalorder %s16, 1
    %p34 = por %p32, %p33
    %p35 = scmp.ne.s32.totalorder %s24, %s25
    %p36 = scmp.eq.s32.totalorder %s16, 0
    %p37 = por %p35, %p36
    %p38 = scmp.ne.s32.totalorder %s24, %s25
    %p39 = scmp.eq.s32.totalorder %s17, 1
    %p40 = por %p38, %p39
    %p42 = scmp.ne.s32.totalorder %s25, %s41
    %p43 = scmp.eq.s32.totalorder %s17, 0
    %p44 = por %p42, %p43
    %s46 = sadd.s32 %s45, 1
    %p49 = scmp.eq.s32.totalorder %s11, 1
    %p50 = scmp.ne.s32.totalorder %s45, %s47
    %p51 = scmp.eq.s32.totalorder %s11, 0
    %p52 = por %p50, %p51
    %p53 = scmp.ne.s32.totalorder %s45, %s47
    %p54 = scmp.eq.s32.totalorder %s16, 1
    %p55 = por %p53, %p54
    %p56 = scmp.ne.s32.totalorder %s47, %s48
    %p57 = scmp.eq.s32.totalorder %s16, 0
    %p58 = por %p56, %p57
    %p59 = scmp.ne.s32.totalorder %s47, %s48
    %p60 = scmp.eq.s32.totalorder %s17, 1
    %p61 = por %p59, %p60
    %p63 = scmp.ne.s32.totalorder %s48, %s62
    %p64 = scmp.eq.s32.totalorder %s17, 0
    %p65 = por %p63, %p64
    %s67 = sadd.s32 %s66, 1
    %p70 = scmp.eq.s32.totalorder %s11, 1
    %p71 = scmp.ne.s32.totalorder %s66, %s68
    %p72 = scmp.eq.s32.totalorder %s11, 0
    %p73 = por %p71, %p72
    %p74 = scmp.ne.s32.totalorder %s66, %s68
    %p75 = scmp.eq.s32.totalorder %s16, 1
    %p76 = por %p74, %p75
    %p77 = scmp.ne.s32.totalorder %s68, %s69
    %p78 = scmp.eq.s32.totalorder %s16, 0
    %p79 = por %p77, %p78
    %p80 = scmp.ne.s32.totalorder %s68, %s69
    %p81 = scmp.eq.s32.totalorder %s17, 1
    %p82 = por %p80, %p81
    %p84 = scmp.ne.s32.totalorder %s69, %s83
    %p85 = scmp.eq.s32.totalorder %s17, 0
    %p86 = por %p84, %p85
    %s87 = ssub.s32 %s11, %s18
    %p88 = scmp.eq.s32.totalorder %s87, 0
    %s90 = sadd.s32 %s89, 1
    %s91 = scalar_select %p88, %s89, %s90
    %p94 = pneg %p88
    %p95 = scmp.eq.s32.totalorder %s11, 1
    %p96 = por %p94, %p95
    %p97 = scmp.ne.s32.totalorder %s89, %s92
    %p98 = scmp.eq.s32.totalorder %s11, 0
    %p99 = por %p97, %p98
    %p100 = scmp.ne.s32.totalorder %s89, %s92
    %p101 = scmp.eq.s32.totalorder %s16, 1
    %p102 = por %p100, %p101
    %p103 = scmp.ne.s32.totalorder %s92, %s93
    %p104 = scmp.eq.s32.totalorder %s16, 0
    %p105 = por %p103, %p104
    %p106 = scmp.ne.s32.totalorder %s92, %s93
    %p107 = scmp.eq.s32.totalorder %s17, 1
    %p108 = por %p106, %p107
    %p110 = scmp.ne.s32.totalorder %s93, %s109
    %p111 = scmp.eq.s32.totalorder %s17, 0
    %p112 = por %p110, %p111
    %s114 = sadd.s32 %s113, 1
    %p117 = scmp.eq.s32.totalorder %s11, 1
    %p118 = scmp.ne.s32.totalorder %s113, %s115
    %p119 = scmp.eq.s32.totalorder %s11, 0
    %p120 = por %p118, %p119
    %p121 = scmp.ne.s32.totalorder %s113, %s115
    %p122 = scmp.eq.s32.totalorder %s16, 1
    %p123 = por %p121, %p122
    %p124 = scmp.ne.s32.totalorder %s115, %s116
    %p125 = scmp.eq.s32.totalorder %s16, 0
    %p126 = por %p124, %p125
    %p127 = scmp.ne.s32.totalorder %s115, %s116
    %p128 = scmp.eq.s32.totalorder %s17, 1
    %p129 = por %p127, %p128
    %p131 = scmp.ne.s32.totalorder %s116, %s130
    %p132 = scmp.eq.s32.totalorder %s17, 0
    %p133 = por %p131, %p132
    %p134 = scmp.le.s32.totalorder 1, %s11
    %p135 = scmp.lt.s32.totalorder %s11, 3
    %p136 = pnand %p134, %p135
    %p137 = pneg %p136
    // Predicated region
    $region9: #{linear_block_forward.2} parent=5 // pred_check
      _
    $region10: #{linear_block_forward.2} parent=5 // pred_check_branch
      %139 = sbr.rel (%p136) target = $region12
    $region11: #{linear_block_forward.2} parent=5 // pred_region
      %s140 = ssub.s32 %s11, 1
      // Predicated region
      $region13: #{linear_block_forward.2} parent=11 // pred_check
        %p141 = pneg %p58
      $region14: #{linear_block_forward.2} parent=11 // pred_check_branch
        %143 = sbr.rel (%p141) target = $region16
      $region15: #{linear_block_forward.2} parent=11 // pred_region
        _
      $region16: #{linear_block_forward.2} parent=11 // pred_fallthru
        _
      // Predicated region
      $region17: #{linear_block_forward.2} parent=11 // pred_check
        %p144 = pneg %p79
      $region18: #{linear_block_forward.2} parent=11 // pred_check_branch
        %146 = sbr.rel (%p144) target = $region20
      $region19: #{linear_block_forward.2} parent=11 // pred_region
        _
      $region20: #{linear_block_forward.2} parent=11 // pred_fallthru
        _
    $region12: #{linear_block_forward.2} parent=5 // pred_fallthru
      _
    %p147 = scmp.lt.s32.totalorder %s11, 2
    // Predicated region
    $region21: #{linear_block_forward.2} parent=5 // pred_check
      %p148 = pneg %p147
    $region22: #{linear_block_forward.2} parent=5 // pred_check_branch
      %150 = sbr.rel (%p148) target = $region24
    $region23: #{linear_block_forward.2} parent=5 // pred_region
      // Predicated region
      $region25: #{linear_block_forward.2} parent=23 // pred_check
        %p151 = pneg %p31
      $region26: #{linear_block_forward.2} parent=23 // pred_check_branch
        %153 = sbr.rel (%p151) target = $region28
      $region27: #{linear_block_forward.2} parent=23 // pred_region
        %s154 = smul.u32 32, %s11
        %p155 = scmp.lt.s32.totalorder %s154, 63
        %s156 = scalar_select %p155, %s154, 63
        %s157 = smul.addr %s156, 4
        %s158 = smul.addr %s157, 4
        %s159 = scalar_lea.vmem %s0, %s158
        %s160 = smul.u32 32, %s11
      $region28: #{linear_block_forward.2} parent=23 // pred_fallthru
        _
    $region24: #{linear_block_forward.2} parent=5 // pred_fallthru
      _
    %p161 = scmp.le.s32.totalorder 1, %s11
    %p162 = scmp.lt.s32.totalorder %s11, 3
    %p163 = pnand %p161, %p162
    %p164 = pneg %p163
    // Predicated region
    $region29: #{linear_block_forward.2} parent=5 // pred_check
      _
    $region30: #{linear_block_forward.2} parent=5 // pred_check_branch
      %166 = sbr.rel (%p163) target = $region32
    $region31: #{linear_block_forward.2} parent=5 // pred_region
      %s167 = ssub.s32 %s11, 1
      %s168 = smul.u32 32, %s16
      %p169 = scmp.lt.s32.totalorder %s168, 63
      %s170 = scalar_select %p169, %s168, 63
      %s171 = smul.addr %s170, 4
      %s172 = smul.addr %s171, 4
      %s173 = scalar_lea.vmem %s0, %s172
      %p174 = pneg %p37
      %p175 = pneg %p34
      %p176 = pneg %p58
      %p177 = pneg %p55
      %p178 = pneg %p79
      %p179 = pneg %p76
      %p180 = pneg %p105
      %p181 = pneg %p102
      %s182 = smul.u32 32, %s16
      %p183 = scmp.lt.s32.totalorder %s182, 63
      %s184 = scalar_select %p183, %s182, 63
      %s185 = smul.addr %s184, 2
      %s186 = smul.addr %s185, 8
      %s187 = scalar_lea.vmem %s3, %s186
      %p188 = pneg %p126
      %p189 = pneg %p123
      %s190 = smul.u32 32, %s16
      %p191 = scmp.lt.s32.totalorder %s190, 63
      %s192 = scalar_select %p191, %s190, 63
      %s193 = smul.addr %s192, 4
      %s194 = smul.addr %s193, 4
      %s195 = scalar_lea.vmem %s0, %s194
      %s196 = smul.u32 32, %s16
      %s197 = smul.u32 32, %s16
      %p198 = scmp.lt.s32.totalorder %s197, 63
      %s199 = scalar_select %p198, %s197, 63
      %s200 = smul.addr %s199, 2
      %s201 = smul.addr %s200, 8
      %s202 = scalar_lea.vmem %s3, %s201
      %s203 = smul.u32 32, %s16
      %p204 = scmp.eq.s32.totalorder %s16, 0
      // Predicated region
      $region33: #{linear_block_forward.2} parent=31 // pred_check
        %p205 = pneg %p204
      $region34: #{linear_block_forward.2} parent=31 // pred_check_branch
        %207 = sbr.rel (%p205) target = $region36
      $region35: #{linear_block_forward.2} parent=31 // pred_region
        %208 = vst [vmem:[#allocation2] sm:$0xf] 0.0
      $region36: #{linear_block_forward.2} parent=31 // pred_fallthru
        _
      %v209 = vld [vmem:[%s195] sm:$0xff]
      %v210 = vld [vmem:[%s195 + $0x8] sm:$0xff]
      %v211 = vld [vmem:[%s195 + $0x10] sm:$0xff]
      %v212 = vld [vmem:[%s195 + $0x18] sm:$0xff]
      %v213 = vld [vmem:[%s195 + $0x20] sm:$0xff]
      %v214 = vld [vmem:[%s195 + $0x28] sm:$0xff]
      %v215 = vld [vmem:[%s195 + $0x30] sm:$0xff]
      %v216 = vld [vmem:[%s195 + $0x38] sm:$0xff]
      %v217 = vld [vmem:[%s195 + $0x40] sm:$0xff]
      %v218 = vld [vmem:[%s195 + $0x48] sm:$0xff]
      %v219 = vld [vmem:[%s195 + $0x50] sm:$0xff]
      %v220 = vld [vmem:[%s195 + $0x58] sm:$0xff]
      %v221 = vld [vmem:[%s195 + $0x60] sm:$0xff]
      %v222 = vld [vmem:[%s195 + $0x68] sm:$0xff]
      %v223 = vld [vmem:[%s195 + $0x70] sm:$0xff]
      %v224 = vld [vmem:[%s195 + $0x78] sm:$0xff]
      %v225 = vld [vmem:[%s195 + $0x80] sm:$0xff]
      %v226 = vld [vmem:[%s195 + $0x88] sm:$0xff]
      %v227 = vld [vmem:[%s195 + $0x90] sm:$0xff]
      %v228 = vld [vmem:[%s195 + $0x98] sm:$0xff]
      %v229 = vld [vmem:[%s195 + $0xa0] sm:$0xff]
      %v230 = vld [vmem:[%s195 + $0xa8] sm:$0xff]
      %v231 = vld [vmem:[%s195 + $0xb0] sm:$0xff]
      %v232 = vld [vmem:[%s195 + $0xb8] sm:$0xff]
      %v233 = vld [vmem:[%s195 + $0xc0] sm:$0xff]
      %v234 = vld [vmem:[%s195 + $0xc8] sm:$0xff]
      %v235 = vld [vmem:[%s195 + $0xd0] sm:$0xff]
      %v236 = vld [vmem:[%s195 + $0xd8] sm:$0xff]
      %v237 = vld [vmem:[%s195 + $0xe0] sm:$0xff]
      %v238 = vld [vmem:[%s195 + $0xe8] sm:$0xff]
      %v239 = vld [vmem:[%s195 + $0xf0] sm:$0xff]
      %v240 = vld [vmem:[%s195 + $0xf8] sm:$0xff]
      %v241 = vld [vmem:[%s195 + $0x100] sm:$0xff]
      %v242 = vld [vmem:[%s195 + $0x108] sm:$0xff]
      %v243 = vld [vmem:[%s195 + $0x110] sm:$0xff]
      %v244 = vld [vmem:[%s195 + $0x118] sm:$0xff]
      %v245 = vld [vmem:[%s195 + $0x120] sm:$0xff]
      %v246 = vld [vmem:[%s195 + $0x128] sm:$0xff]
      %v247 = vld [vmem:[%s195 + $0x130] sm:$0xff]
      %v248 = vld [vmem:[%s195 + $0x138] sm:$0xff]
      %v249 = vld [vmem:[%s195 + $0x140] sm:$0xff]
      %v250 = vld [vmem:[%s195 + $0x148] sm:$0xff]
      %v251 = vld [vmem:[%s195 + $0x150] sm:$0xff]
      %v252 = vld [vmem:[%s195 + $0x158] sm:$0xff]
      %v253 = vld [vmem:[%s195 + $0x160] sm:$0xff]
      %v254 = vld [vmem:[%s195 + $0x168] sm:$0xff]
      %v255 = vld [vmem:[%s195 + $0x170] sm:$0xff]
      %v256 = vld [vmem:[%s195 + $0x178] sm:$0xff]
      %v257 = vld [vmem:[%s195 + $0x180] sm:$0xff]
      %v258 = vld [vmem:[%s195 + $0x188] sm:$0xff]
      %v259 = vld [vmem:[%s195 + $0x190] sm:$0xff]
      %v260 = vld [vmem:[%s195 + $0x198] sm:$0xff]
      %v261 = vld [vmem:[%s195 + $0x1a0] sm:$0xff]
      %v262 = vld [vmem:[%s195 + $0x1a8] sm:$0xff]
      %v263 = vld [vmem:[%s195 + $0x1b0] sm:$0xff]
      %v264 = vld [vmem:[%s195 + $0x1b8] sm:$0xff]
      %v265 = vld [vmem:[%s195 + $0x1c0] sm:$0xff]
      %v266 = vld [vmem:[%s195 + $0x1c8] sm:$0xff]
      %v267 = vld [vmem:[%s195 + $0x1d0] sm:$0xff]
      %v268 = vld [vmem:[%s195 + $0x1d8] sm:$0xff]
      %v269 = vld [vmem:[%s195 + $0x1e0] sm:$0xff]
      %v270 = vld [vmem:[%s195 + $0x1e8] sm:$0xff]
      %v271 = vld [vmem:[%s195 + $0x1f0] sm:$0xff]
      %v272 = vld [vmem:[%s195 + $0x1f8] sm:$0xff]
      %v273 = vld [vmem:[%s1] sm:$0xff]
      %v274 = vld [vmem:[%s1 + $0x8] sm:$0xff]
      %v275 = vld [vmem:[%s1 + $0x10] sm:$0xff]
      %v276 = vld [vmem:[%s1 + $0x18] sm:$0xff]
      %v277 = vld [vmem:[%s1 + $0x20] sm:$0xff]
      %v278 = vld [vmem:[%s1 + $0x28] sm:$0xff]
      %v279 = vld [vmem:[%s1 + $0x30] sm:$0xff]
      %v280 = vld [vmem:[%s1 + $0x38] sm:$0xff]
      %v281 = vld [vmem:[%s1 + $0x40] sm:$0xff]
      %v282 = vld [vmem:[%s1 + $0x48] sm:$0xff]
      %v283 = vld [vmem:[%s1 + $0x50] sm:$0xff]
      %v284 = vld [vmem:[%s1 + $0x58] sm:$0xff]
      %v285 = vld [vmem:[%s1 + $0x60] sm:$0xff]
      %v286 = vld [vmem:[%s1 + $0x68] sm:$0xff]
      %v287 = vld [vmem:[%s1 + $0x70] sm:$0xff]
      %v288 = vld [vmem:[%s1 + $0x78] sm:$0xff]
      %v289 = vld [vmem:[%s1 + $0x80] sm:$0xff]
      %v290 = vld [vmem:[%s1 + $0x88] sm:$0xff]
      %v291 = vld [vmem:[%s1 + $0x90] sm:$0xff]
      %v292 = vld [vmem:[%s1 + $0x98] sm:$0xff]
      %v293 = vld [vmem:[%s1 + $0xa0] sm:$0xff]
      %v294 = vld [vmem:[%s1 + $0xa8] sm:$0xff]
      %v295 = vld [vmem:[%s1 + $0xb0] sm:$0xff]
      %v296 = vld [vmem:[%s1 + $0xb8] sm:$0xff]
      %v297 = vld [vmem:[%s1 + $0xc0] sm:$0xff]
      %v298 = vld [vmem:[%s1 + $0xc8] sm:$0xff]
      %v299 = vld [vmem:[%s1 + $0xd0] sm:$0xff]
      %v300 = vld [vmem:[%s1 + $0xd8] sm:$0xff]
      %v301 = vld [vmem:[%s1 + $0xe0] sm:$0xff]
      %v302 = vld [vmem:[%s1 + $0xe8] sm:$0xff]
      %v303 = vld [vmem:[%s1 + $0xf0] sm:$0xff]
      %v304 = vld [vmem:[%s1 + $0xf8] sm:$0xff]
      %v305 = vld [vmem:[%s1 + $0x100] sm:$0xff]
      %v306 = vld [vmem:[%s1 + $0x108] sm:$0xff]
      %v307 = vld [vmem:[%s1 + $0x110] sm:$0xff]
      %v308 = vld [vmem:[%s1 + $0x118] sm:$0xff]
      %v309 = vld [vmem:[%s1 + $0x120] sm:$0xff]
      %v310 = vld [vmem:[%s1 + $0x128] sm:$0xff]
      %v311 = vld [vmem:[%s1 + $0x130] sm:$0xff]
      %v312 = vld [vmem:[%s1 + $0x138] sm:$0xff]
      %v313 = vld [vmem:[%s1 + $0x140] sm:$0xff]
      %v314 = vld [vmem:[%s1 + $0x148] sm:$0xff]
      %v315 = vld [vmem:[%s1 + $0x150] sm:$0xff]
      %v316 = vld [vmem:[%s1 + $0x158] sm:$0xff]
      %v317 = vld [vmem:[%s1 + $0x160] sm:$0xff]
      %v318 = vld [vmem:[%s1 + $0x168] sm:$0xff]
      %v319 = vld [vmem:[%s1 + $0x170] sm:$0xff]
      %v320 = vld [vmem:[%s1 + $0x178] sm:$0xff]
      %v321 = vld [vmem:[%s1 + $0x180] sm:$0xff]
      %v322 = vld [vmem:[%s1 + $0x188] sm:$0xff]
      %v323 = vld [vmem:[%s1 + $0x190] sm:$0xff]
      %v324 = vld [vmem:[%s1 + $0x198] sm:$0xff]
      %v325 = vld [vmem:[%s1 + $0x1a0] sm:$0xff]
      %v326 = vld [vmem:[%s1 + $0x1a8] sm:$0xff]
      %v327 = vld [vmem:[%s1 + $0x1b0] sm:$0xff]
      %v328 = vld [vmem:[%s1 + $0x1b8] sm:$0xff]
      %v329 = vld [vmem:[%s1 + $0x1c0] sm:$0xff]
      %v330 = vld [vmem:[%s1 + $0x1c8] sm:$0xff]
      %v331 = vld [vmem:[%s1 + $0x1d0] sm:$0xff]
      %v332 = vld [vmem:[%s1 + $0x1d8] sm:$0xff]
      %v333 = vld [vmem:[%s1 + $0x1e0] sm:$0xff]
      %v334 = vld [vmem:[%s1 + $0x1e8] sm:$0xff]
      %v335 = vld [vmem:[%s1 + $0x1f0] sm:$0xff]
      %v336 = vld [vmem:[%s1 + $0x1f8] sm:$0xff]
      %v337 = vld [vmem:[%s2] sm:$0x3]
      %v339 = vlaneseq
      %v340 = vshrl.u32 %v339, 7
      %v341 = vsub.s32 0, %v340
      %v342 = vrot.slane %v337, %v341
      %v343 = vlaneseq
      %v344 = vshrl.u32 %v343, 7
      %v345 = vsub.s32 1, %v344
      %v346 = vrot.slane %v337, %v345
      %v413 = vunpack.c.l.b16 %v209
      %v414 = vunpack.c.h.b16 %v209
      %v415 = vunpack.c.l.b16 %v210
      %v416 = vunpack.c.h.b16 %v210
      %v417 = vunpack.c.l.b16 %v211
      %v418 = vunpack.c.h.b16 %v211
      %v419 = vunpack.c.l.b16 %v212
      %v420 = vunpack.c.h.b16 %v212
      %v421 = vunpack.c.l.b16 %v213
      %v422 = vunpack.c.h.b16 %v213
      %v423 = vunpack.c.l.b16 %v214
      %v424 = vunpack.c.h.b16 %v214
      %v425 = vunpack.c.l.b16 %v215
      %v426 = vunpack.c.h.b16 %v215
      %v427 = vunpack.c.l.b16 %v216
      %v428 = vunpack.c.h.b16 %v216
      %v429 = vunpack.c.l.b16 %v217
      %v430 = vunpack.c.h.b16 %v217
      %v431 = vunpack.c.l.b16 %v218
      %v432 = vunpack.c.h.b16 %v218
      %v433 = vunpack.c.l.b16 %v219
      %v434 = vunpack.c.h.b16 %v219
      %v435 = vunpack.c.l.b16 %v220
      %v436 = vunpack.c.h.b16 %v220
      %v437 = vunpack.c.l.b16 %v221
      %v438 = vunpack.c.h.b16 %v221
      %v439 = vunpack.c.l.b16 %v222
      %v440 = vunpack.c.h.b16 %v222
      %v441 = vunpack.c.l.b16 %v223
      %v442 = vunpack.c.h.b16 %v223
      %v443 = vunpack.c.l.b16 %v224
      %v444 = vunpack.c.h.b16 %v224
      %v445 = vunpack.c.l.b16 %v225
      %v446 = vunpack.c.h.b16 %v225
      %v447 = vunpack.c.l.b16 %v226
      %v448 = vunpack.c.h.b16 %v226
      %v449 = vunpack.c.l.b16 %v227
      %v450 = vunpack.c.h.b16 %v227
      %v451 = vunpack.c.l.b16 %v228
      %v452 = vunpack.c.h.b16 %v228
      %v453 = vunpack.c.l.b16 %v229
      %v454 = vunpack.c.h.b16 %v229
      %v455 = vunpack.c.l.b16 %v230
      %v456 = vunpack.c.h.b16 %v230
      %v457 = vunpack.c.l.b16 %v231
      %v458 = vunpack.c.h.b16 %v231
      %v459 = vunpack.c.l.b16 %v232
      %v460 = vunpack.c.h.b16 %v232
      %v461 = vunpack.c.l.b16 %v233
      %v462 = vunpack.c.h.b16 %v233
      %v463 = vunpack.c.l.b16 %v234
      %v464 = vunpack.c.h.b16 %v234
      %v465 = vunpack.c.l.b16 %v235
      %v466 = vunpack.c.h.b16 %v235
      %v467 = vunpack.c.l.b16 %v236
      %v468 = vunpack.c.h.b16 %v236
      %v469 = vunpack.c.l.b16 %v237
      %v470 = vunpack.c.h.b16 %v237
      %v471 = vunpack.c.l.b16 %v238
      %v472 = vunpack.c.h.b16 %v238
      %v473 = vunpack.c.l.b16 %v239
      %v474 = vunpack.c.h.b16 %v239
      %v475 = vunpack.c.l.b16 %v240
      %v476 = vunpack.c.h.b16 %v240
      %v477 = vunpack.c.l.b16 %v241
      %v478 = vunpack.c.h.b16 %v241
      %v479 = vunpack.c.l.b16 %v242
      %v480 = vunpack.c.h.b16 %v242
      %v481 = vunpack.c.l.b16 %v243
      %v482 = vunpack.c.h.b16 %v243
      %v483 = vunpack.c.l.b16 %v244
      %v484 = vunpack.c.h.b16 %v244
      %v485 = vunpack.c.l.b16 %v245
      %v486 = vunpack.c.h.b16 %v245
      %v487 = vunpack.c.l.b16 %v246
      %v488 = vunpack.c.h.b16 %v246
      %v489 = vunpack.c.l.b16 %v247
      %v490 = vunpack.c.h.b16 %v247
      %v491 = vunpack.c.l.b16 %v248
      %v492 = vunpack.c.h.b16 %v248
      %v493 = vunpack.c.l.b16 %v249
      %v494 = vunpack.c.h.b16 %v249
      %v495 = vunpack.c.l.b16 %v250
      %v496 = vunpack.c.h.b16 %v250
      %v497 = vunpack.c.l.b16 %v251
      %v498 = vunpack.c.h.b16 %v251
      %v499 = vunpack.c.l.b16 %v252
      %v500 = vunpack.c.h.b16 %v252
      %v501 = vunpack.c.l.b16 %v253
      %v502 = vunpack.c.h.b16 %v253
      %v503 = vunpack.c.l.b16 %v254
      %v504 = vunpack.c.h.b16 %v254
      %v505 = vunpack.c.l.b16 %v255
      %v506 = vunpack.c.h.b16 %v255
      %v507 = vunpack.c.l.b16 %v256
      %v508 = vunpack.c.h.b16 %v256
      %v509 = vunpack.c.l.b16 %v257
      %v510 = vunpack.c.h.b16 %v257
      %v511 = vunpack.c.l.b16 %v258
      %v512 = vunpack.c.h.b16 %v258
      %v513 = vunpack.c.l.b16 %v259
      %v514 = vunpack.c.h.b16 %v259
      %v515 = vunpack.c.l.b16 %v260
      %v516 = vunpack.c.h.b16 %v260
      %v517 = vunpack.c.l.b16 %v261
      %v518 = vunpack.c.h.b16 %v261
      %v519 = vunpack.c.l.b16 %v262
      %v520 = vunpack.c.h.b16 %v262
      %v521 = vunpack.c.l.b16 %v263
      %v522 = vunpack.c.h.b16 %v263
      %v523 = vunpack.c.l.b16 %v264
      %v524 = vunpack.c.h.b16 %v264
      %v525 = vunpack.c.l.b16 %v265
      %v526 = vunpack.c.h.b16 %v265
      %v527 = vunpack.c.l.b16 %v266
      %v528 = vunpack.c.h.b16 %v266
      %v529 = vunpack.c.l.b16 %v267
      %v530 = vunpack.c.h.b16 %v267
      %v531 = vunpack.c.l.b16 %v268
      %v532 = vunpack.c.h.b16 %v268
      %v533 = vunpack.c.l.b16 %v269
      %v534 = vunpack.c.h.b16 %v269
      %v535 = vunpack.c.l.b16 %v270
      %v536 = vunpack.c.h.b16 %v270
      %v537 = vunpack.c.l.b16 %v271
      %v538 = vunpack.c.h.b16 %v271
      %v539 = vunpack.c.l.b16 %v272
      %v540 = vunpack.c.h.b16 %v272
      %v541 = vpack.c.b16 %v417, %v413
      %v542 = vpack.c.b16 %v418, %v414
      %v543 = vpack.c.b16 %v419, %v415
      %v544 = vpack.c.b16 %v420, %v416
      %v545 = vpack.c.b16 %v425, %v421
      %v546 = vpack.c.b16 %v426, %v422
      %v547 = vpack.c.b16 %v427, %v423
      %v548 = vpack.c.b16 %v428, %v424
      %v549 = vpack.c.b16 %v433, %v429
      %v550 = vpack.c.b16 %v434, %v430
      %v551 = vpack.c.b16 %v435, %v431
      %v552 = vpack.c.b16 %v436, %v432
      %v553 = vpack.c.b16 %v441, %v437
      %v554 = vpack.c.b16 %v442, %v438
      %v555 = vpack.c.b16 %v443, %v439
      %v556 = vpack.c.b16 %v444, %v440
      %v557 = vpack.c.b16 %v449, %v445
      %v558 = vpack.c.b16 %v450, %v446
      %v559 = vpack.c.b16 %v451, %v447
      %v560 = vpack.c.b16 %v452, %v448
      %v561 = vpack.c.b16 %v457, %v453
      %v562 = vpack.c.b16 %v458, %v454
      %v563 = vpack.c.b16 %v459, %v455
      %v564 = vpack.c.b16 %v460, %v456
      %v565 = vpack.c.b16 %v465, %v461
      %v566 = vpack.c.b16 %v466, %v462
      %v567 = vpack.c.b16 %v467, %v463
      %v568 = vpack.c.b16 %v468, %v464
      %v569 = vpack.c.b16 %v473, %v469
      %v570 = vpack.c.b16 %v474, %v470
      %v571 = vpack.c.b16 %v475, %v471
      %v572 = vpack.c.b16 %v476, %v472
      %v573 = vpack.c.b16 %v481, %v477
      %v574 = vpack.c.b16 %v482, %v478
      %v575 = vpack.c.b16 %v483, %v479
      %v576 = vpack.c.b16 %v484, %v480
      %v577 = vpack.c.b16 %v489, %v485
      %v578 = vpack.c.b16 %v490, %v486
      %v579 = vpack.c.b16 %v491, %v487
      %v580 = vpack.c.b16 %v492, %v488
      %v581 = vpack.c.b16 %v497, %v493
      %v582 = vpack.c.b16 %v498, %v494
      %v583 = vpack.c.b16 %v499, %v495
      %v584 = vpack.c.b16 %v500, %v496
      %v585 = vpack.c.b16 %v505, %v501
      %v586 = vpack.c.b16 %v506, %v502
      %v587 = vpack.c.b16 %v507, %v503
      %v588 = vpack.c.b16 %v508, %v504
      %v589 = vpack.c.b16 %v513, %v509
      %v590 = vpack.c.b16 %v514, %v510
      %v591 = vpack.c.b16 %v515, %v511
      %v592 = vpack.c.b16 %v516, %v512
      %v593 = vpack.c.b16 %v521, %v517
      %v594 = vpack.c.b16 %v522, %v518
      %v595 = vpack.c.b16 %v523, %v519
      %v596 = vpack.c.b16 %v524, %v520
      %v597 = vpack.c.b16 %v529, %v525
      %v598 = vpack.c.b16 %v530, %v526
      %v599 = vpack.c.b16 %v531, %v527
      %v600 = vpack.c.b16 %v532, %v528
      %v601 = vpack.c.b16 %v537, %v533
      %v602 = vpack.c.b16 %v538, %v534
      %v603 = vpack.c.b16 %v539, %v535
      %v604 = vpack.c.b16 %v540, %v536
      %v733 = vunpack.c.l.b16 %v273
      %v734 = vunpack.c.h.b16 %v273
      %v735 = vunpack.c.l.b16 %v274
      %v736 = vunpack.c.h.b16 %v274
      %v737 = vunpack.c.l.b16 %v275
      %v738 = vunpack.c.h.b16 %v275
      %v739 = vunpack.c.l.b16 %v276
      %v740 = vunpack.c.h.b16 %v276
      %v741 = vunpack.c.l.b16 %v277
      %v742 = vunpack.c.h.b16 %v277
      %v743 = vunpack.c.l.b16 %v278
      %v744 = vunpack.c.h.b16 %v278
      %v745 = vunpack.c.l.b16 %v279
      %v746 = vunpack.c.h.b16 %v279
      %v747 = vunpack.c.l.b16 %v280
      %v748 = vunpack.c.h.b16 %v280
      %v749 = vunpack.c.l.b16 %v281
      %v750 = vunpack.c.h.b16 %v281
      %v751 = vunpack.c.l.b16 %v282
      %v752 = vunpack.c.h.b16 %v282
      %v753 = vunpack.c.l.b16 %v283
      %v754 = vunpack.c.h.b16 %v283
      %v755 = vunpack.c.l.b16 %v284
      %v756 = vunpack.c.h.b16 %v284
      %v757 = vunpack.c.l.b16 %v285
      %v758 = vunpack.c.h.b16 %v285
      %v759 = vunpack.c.l.b16 %v286
      %v760 = vunpack.c.h.b16 %v286
      %v761 = vunpack.c.l.b16 %v287
      %v762 = vunpack.c.h.b16 %v287
      %v763 = vunpack.c.l.b16 %v288
      %v764 = vunpack.c.h.b16 %v288
      %v765 = vunpack.c.l.b16 %v289
      %v766 = vunpack.c.h.b16 %v289
      %v767 = vunpack.c.l.b16 %v290
      %v768 = vunpack.c.h.b16 %v290
      %v769 = vunpack.c.l.b16 %v291
      %v770 = vunpack.c.h.b16 %v291
      %v771 = vunpack.c.l.b16 %v292
      %v772 = vunpack.c.h.b16 %v292
      %v773 = vunpack.c.l.b16 %v293
      %v774 = vunpack.c.h.b16 %v293
      %v775 = vunpack.c.l.b16 %v294
      %v776 = vunpack.c.h.b16 %v294
      %v777 = vunpack.c.l.b16 %v295
      %v778 = vunpack.c.h.b16 %v295
      %v779 = vunpack.c.l.b16 %v296
      %v780 = vunpack.c.h.b16 %v296
      %v781 = vunpack.c.l.b16 %v297
      %v782 = vunpack.c.h.b16 %v297
      %v783 = vunpack.c.l.b16 %v298
      %v784 = vunpack.c.h.b16 %v298
      %v785 = vunpack.c.l.b16 %v299
      %v786 = vunpack.c.h.b16 %v299
      %v787 = vunpack.c.l.b16 %v300
      %v788 = vunpack.c.h.b16 %v300
      %v789 = vunpack.c.l.b16 %v301
      %v790 = vunpack.c.h.b16 %v301
      %v791 = vunpack.c.l.b16 %v302
      %v792 = vunpack.c.h.b16 %v302
      %v793 = vunpack.c.l.b16 %v303
      %v794 = vunpack.c.h.b16 %v303
      %v795 = vunpack.c.l.b16 %v304
      %v796 = vunpack.c.h.b16 %v304
      %v797 = vunpack.c.l.b16 %v305
      %v798 = vunpack.c.h.b16 %v305
      %v799 = vunpack.c.l.b16 %v306
      %v800 = vunpack.c.h.b16 %v306
      %v801 = vunpack.c.l.b16 %v307
      %v802 = vunpack.c.h.b16 %v307
      %v803 = vunpack.c.l.b16 %v308
      %v804 = vunpack.c.h.b16 %v308
      %v805 = vunpack.c.l.b16 %v309
      %v806 = vunpack.c.h.b16 %v309
      %v807 = vunpack.c.l.b16 %v310
      %v808 = vunpack.c.h.b16 %v310
      %v809 = vunpack.c.l.b16 %v311
      %v810 = vunpack.c.h.b16 %v311
      %v811 = vunpack.c.l.b16 %v312
      %v812 = vunpack.c.h.b16 %v312
      %v813 = vunpack.c.l.b16 %v313
      %v814 = vunpack.c.h.b16 %v313
      %v815 = vunpack.c.l.b16 %v314
      %v816 = vunpack.c.h.b16 %v314
      %v817 = vunpack.c.l.b16 %v315
      %v818 = vunpack.c.h.b16 %v315
      %v819 = vunpack.c.l.b16 %v316
      %v820 = vunpack.c.h.b16 %v316
      %v821 = vunpack.c.l.b16 %v317
      %v822 = vunpack.c.h.b16 %v317
      %v823 = vunpack.c.l.b16 %v318
      %v824 = vunpack.c.h.b16 %v318
      %v825 = vunpack.c.l.b16 %v319
      %v826 = vunpack.c.h.b16 %v319
      %v827 = vunpack.c.l.b16 %v320
      %v828 = vunpack.c.h.b16 %v320
      %v829 = vunpack.c.l.b16 %v321
      %v830 = vunpack.c.h.b16 %v321
      %v831 = vunpack.c.l.b16 %v322
      %v832 = vunpack.c.h.b16 %v322
      %v833 = vunpack.c.l.b16 %v323
      %v834 = vunpack.c.h.b16 %v323
      %v835 = vunpack.c.l.b16 %v324
      %v836 = vunpack.c.h.b16 %v324
      %v837 = vunpack.c.l.b16 %v325
      %v838 = vunpack.c.h.b16 %v325
      %v839 = vunpack.c.l.b16 %v326
      %v840 = vunpack.c.h.b16 %v326
      %v841 = vunpack.c.l.b16 %v327
      %v842 = vunpack.c.h.b16 %v327
      %v843 = vunpack.c.l.b16 %v328
      %v844 = vunpack.c.h.b16 %v328
      %v845 = vunpack.c.l.b16 %v329
      %v846 = vunpack.c.h.b16 %v329
      %v847 = vunpack.c.l.b16 %v330
      %v848 = vunpack.c.h.b16 %v330
      %v849 = vunpack.c.l.b16 %v331
      %v850 = vunpack.c.h.b16 %v331
      %v851 = vunpack.c.l.b16 %v332
      %v852 = vunpack.c.h.b16 %v332
      %v853 = vunpack.c.l.b16 %v333
      %v854 = vunpack.c.h.b16 %v333
      %v855 = vunpack.c.l.b16 %v334
      %v856 = vunpack.c.h.b16 %v334
      %v857 = vunpack.c.l.b16 %v335
      %v858 = vunpack.c.h.b16 %v335
      %v859 = vunpack.c.l.b16 %v336
      %v860 = vunpack.c.h.b16 %v336
      %v861 = vpack.c.b16 %v735, %v733
      %v862 = vpack.c.b16 %v736, %v734
      %v863 = vpack.c.b16 %v739, %v737
      %v864 = vpack.c.b16 %v740, %v738
      %v865 = vpack.c.b16 %v743, %v741
      %v866 = vpack.c.b16 %v744, %v742
      %v867 = vpack.c.b16 %v747, %v745
      %v868 = vpack.c.b16 %v748, %v746
      %v869 = vpack.c.b16 %v751, %v749
      %v870 = vpack.c.b16 %v752, %v750
      %v871 = vpack.c.b16 %v755, %v753
      %v872 = vpack.c.b16 %v756, %v754
      %v873 = vpack.c.b16 %v759, %v757
      %v874 = vpack.c.b16 %v760, %v758
      %v875 = vpack.c.b16 %v763, %v761
      %v876 = vpack.c.b16 %v764, %v762
      %v877 = vpack.c.b16 %v767, %v765
      %v878 = vpack.c.b16 %v768, %v766
      %v879 = vpack.c.b16 %v771, %v769
      %v880 = vpack.c.b16 %v772, %v770
      %v881 = vpack.c.b16 %v775, %v773
      %v882 = vpack.c.b16 %v776, %v774
      %v883 = vpack.c.b16 %v779, %v777
      %v884 = vpack.c.b16 %v780, %v778
      %v885 = vpack.c.b16 %v783, %v781
      %v886 = vpack.c.b16 %v784, %v782
      %v887 = vpack.c.b16 %v787, %v785
      %v888 = vpack.c.b16 %v788, %v786
      %v889 = vpack.c.b16 %v791, %v789
      %v890 = vpack.c.b16 %v792, %v790
      %v891 = vpack.c.b16 %v795, %v793
      %v892 = vpack.c.b16 %v796, %v794
      %v893 = vpack.c.b16 %v799, %v797
      %v894 = vpack.c.b16 %v800, %v798
      %v895 = vpack.c.b16 %v803, %v801
      %v896 = vpack.c.b16 %v804, %v802
      %v897 = vpack.c.b16 %v807, %v805
      %v898 = vpack.c.b16 %v808, %v806
      %v899 = vpack.c.b16 %v811, %v809
      %v900 = vpack.c.b16 %v812, %v810
      %v901 = vpack.c.b16 %v815, %v813
      %v902 = vpack.c.b16 %v816, %v814
      %v903 = vpack.c.b16 %v819, %v817
      %v904 = vpack.c.b16 %v820, %v818
      %v905 = vpack.c.b16 %v823, %v821
      %v906 = vpack.c.b16 %v824, %v822
      %v907 = vpack.c.b16 %v827, %v825
      %v908 = vpack.c.b16 %v828, %v826
      %v909 = vpack.c.b16 %v831, %v829
      %v910 = vpack.c.b16 %v832, %v830
      %v911 = vpack.c.b16 %v835, %v833
      %v912 = vpack.c.b16 %v836, %v834
      %v913 = vpack.c.b16 %v839, %v837
      %v914 = vpack.c.b16 %v840, %v838
      %v915 = vpack.c.b16 %v843, %v841
      %v916 = vpack.c.b16 %v844, %v842
      %v917 = vpack.c.b16 %v847, %v845
      %v918 = vpack.c.b16 %v848, %v846
      %v919 = vpack.c.b16 %v851, %v849
      %v920 = vpack.c.b16 %v852, %v850
      %v921 = vpack.c.b16 %v855, %v853
      %v922 = vpack.c.b16 %v856, %v854
      %v923 = vpack.c.b16 %v859, %v857
      %v924 = vpack.c.b16 %v860, %v858
      %989 = vmatprep.subr.bf16.mxu0 %v862
      %990 = vmatpush1.bf16.msra.mxu0 %v861
      %991 = vmatprep.subr.bf16.mxu0 %v864
      %992 = vmatpush1.bf16.msra.mxu0 %v863
      %993 = vmatprep.subr.bf16.mxu0 %v866
      %994 = vmatpush1.bf16.msra.mxu0 %v865
      %995 = vmatprep.subr.bf16.mxu0 %v868
      %996 = vmatpush1.bf16.msra.mxu0 %v867
      %997 = vmatprep.subr.bf16.mxu0 %v870
      %998 = vmatpush1.bf16.msra.mxu0 %v869
      %999 = vmatprep.subr.bf16.mxu0 %v872
      %1000 = vmatpush1.bf16.msra.mxu0 %v871
      %1001 = vmatprep.subr.bf16.mxu0 %v874
      %1002 = vmatpush1.bf16.msra.mxu0 %v873
      %1003 = vmatprep.subr.bf16.mxu0 %v876
      %1004 = vmatpush1.bf16.msra.mxu0 %v875
      %1005 = vmatprep.subr.bf16.mxu0 %v878
      %1006 = vmatpush1.bf16.msra.mxu0 %v877
      %1007 = vmatprep.subr.bf16.mxu0 %v880
      %1008 = vmatpush1.bf16.msra.mxu0 %v879
      %1009 = vmatprep.subr.bf16.mxu0 %v882
      %1010 = vmatpush1.bf16.msra.mxu0 %v881
      %1011 = vmatprep.subr.bf16.mxu0 %v884
      %1012 = vmatpush1.bf16.msra.mxu0 %v883
      %1013 = vmatprep.subr.bf16.mxu0 %v886
      %1014 = vmatpush1.bf16.msra.mxu0 %v885
      %1015 = vmatprep.subr.bf16.mxu0 %v888
      %1016 = vmatpush1.bf16.msra.mxu0 %v887
      %1017 = vmatprep.subr.bf16.mxu0 %v890
      %1018 = vmatpush1.bf16.msra.mxu0 %v889
      %1019 = vmatprep.subr.bf16.mxu0 %v892
      %1020 = vmatpush1.bf16.msra.mxu0 %v891
      %1021 = vmatprep.mubr.bf16.mxu0 %v542
      %1022 = vmatmul.mubr.bf16.gmra.mrb[0].mxu0 %v541
      %v1023 = vpop.f32.mrb[0].mxu0
      %v1024 = vadd.f32 %v342, %v1023
      %v1025 = vpop.f32.mrb[0].mxu0
      %v1026 = vadd.f32 %v346, %v1025
      %v1027 = vpop.f32.mrb[0].mxu0
      %v1028 = vadd.f32 %v342, %v1027
      %v1029 = vpop.f32.mrb[0].mxu0
      %v1030 = vadd.f32 %v346, %v1029
      %1031 = vmatprep.mubr.bf16.mxu0 %v546
      %1032 = vmatmul.mubr.bf16.gmra.mrb[0].mxu0 %v545
      %v1033 = vpop.f32.mrb[0].mxu0
      %v1034 = vadd.f32 %v342, %v1033
      %v1035 = vpop.f32.mrb[0].mxu0
      %v1036 = vadd.f32 %v346, %v1035
      %v1037 = vpop.f32.mrb[0].mxu0
      %v1038 = vadd.f32 %v342, %v1037
      %v1039 = vpop.f32.mrb[0].mxu0
      %v1040 = vadd.f32 %v346, %v1039
      %1041 = vmatprep.mubr.bf16.mxu0 %v550
      %1042 = vmatmul.mubr.bf16.gmra.mrb[0].mxu0 %v549
      %v1043 = vpop.f32.mrb[0].mxu0
      %v1044 = vadd.f32 %v342, %v1043
      %v1045 = vpop.f32.mrb[0].mxu0
      %v1046 = vadd.f32 %v346, %v1045
      %v1047 = vpop.f32.mrb[0].mxu0
      %v1048 = vadd.f32 %v342, %v1047
      %v1049 = vpop.f32.mrb[0].mxu0
      %v1050 = vadd.f32 %v346, %v1049
      %1051 = vmatprep.mubr.bf16.mxu0 %v554
      %1052 = vmatmul.mubr.bf16.gmra.mrb[0].mxu0 %v553
      %v1053 = vpop.f32.mrb[0].mxu0
      %v1054 = vadd.f32 %v342, %v1053
      %v1055 = vpop.f32.mrb[0].mxu0
      %v1056 = vadd.f32 %v346, %v1055
      %v1057 = vpop.f32.mrb[0].mxu0
      %v1058 = vadd.f32 %v342, %v1057
      %v1059 = vpop.f32.mrb[0].mxu0
      %v1060 = vadd.f32 %v346, %v1059
      %1061 = vmatprep.mubr.bf16.mxu0 %v558
      %1062 = vmatmul.mubr.bf16.gmra.mrb[0].mxu0 %v557
      %v1063 = vpop.f32.mrb[0].mxu0
      %v1064 = vadd.f32 %v342, %v1063
      %v1065 = vpop.f32.mrb[0].mxu0
      %v1066 = vadd.f32 %v346, %v1065
      %v1067 = vpop.f32.mrb[0].mxu0
      %v1068 = vadd.f32 %v342, %v1067
      %v1069 = vpop.f32.mrb[0].mxu0
      %v1070 = vadd.f32 %v346, %v1069
      %1071 = vmatprep.mubr.bf16.mxu0 %v562
      %1072 = vmatmul.mubr.bf16.gmra.mrb[0].mxu0 %v561
      %v1073 = vpop.f32.mrb[0].mxu0
      %v1074 = vadd.f32 %v342, %v1073
      %v1075 = vpop.f32.mrb[0].mxu0
      %v1076 = vadd.f32 %v346, %v1075
      %v1077 = vpop.f32.mrb[0].mxu0
      %v1078 = vadd.f32 %v342, %v1077
      %v1079 = vpop.f32.mrb[0].mxu0
      %v1080 = vadd.f32 %v346, %v1079
      %1081 = vmatprep.mubr.bf16.mxu0 %v566
      %1082 = vmatmul.mubr.bf16.gmra.mrb[0].mxu0 %v565
      %v1083 = vpop.f32.mrb[0].mxu0
      %v1084 = vadd.f32 %v342, %v1083
      %v1085 = vpop.f32.mrb[0].mxu0
      %v1086 = vadd.f32 %v346, %v1085
      %v1087 = vpop.f32.mrb[0].mxu0
      %v1088 = vadd.f32 %v342, %v1087
      %v1089 = vpop.f32.mrb[0].mxu0
      %v1090 = vadd.f32 %v346, %v1089
      %1091 = vmatprep.mubr.bf16.mxu0 %v570
      %1092 = vmatmul.mubr.bf16.gmra.mrb[0].mxu0 %v569
      %v1093 = vpop.f32.mrb[0].mxu0
      %v1094 = vadd.f32 %v342, %v1093
      %v1095 = vpop.f32.mrb[0].mxu0
      %v1096 = vadd.f32 %v346, %v1095
      %v1097 = vpop.f32.mrb[0].mxu0
      %v1098 = vadd.f32 %v342, %v1097
      %v1099 = vpop.f32.mrb[0].mxu0
      %v1100 = vadd.f32 %v346, %v1099
      %1101 = vmatprep.mubr.bf16.mxu0 %v574
      %1102 = vmatmul.mubr.bf16.gmra.mrb[0].mxu0 %v573
      %v1103 = vpop.f32.mrb[0].mxu0
      %v1104 = vadd.f32 %v342, %v1103
      %v1105 = vpop.f32.mrb[0].mxu0
      %v1106 = vadd.f32 %v346, %v1105
      %v1107 = vpop.f32.mrb[0].mxu0
      %v1108 = vadd.f32 %v342, %v1107
      %v1109 = vpop.f32.mrb[0].mxu0
      %v1110 = vadd.f32 %v346, %v1109
      %1111 = vmatprep.mubr.bf16.mxu0 %v578
      %1112 = vmatmul.mubr.bf16.gmra.mrb[0].mxu0 %v577
      %v1113 = vpop.f32.mrb[0].mxu0
      %v1114 = vadd.f32 %v342, %v1113
      %v1115 = vpop.f32.mrb[0].mxu0
      %v1116 = vadd.f32 %v346, %v1115
      %v1117 = vpop.f32.mrb[0].mxu0
      %v1118 = vadd.f32 %v342, %v1117
      %v1119 = vpop.f32.mrb[0].mxu0
      %v1120 = vadd.f32 %v346, %v1119
      %1121 = vmatprep.mubr.bf16.mxu0 %v582
      %1122 = vmatmul.mubr.bf16.gmra.mrb[0].mxu0 %v581
      %v1123 = vpop.f32.mrb[0].mxu0
      %v1124 = vadd.f32 %v342, %v1123
      %v1125 = vpop.f32.mrb[0].mxu0
      %v1126 = vadd.f32 %v346, %v1125
      %v1127 = vpop.f32.mrb[0].mxu0
      %v1128 = vadd.f32 %v342, %v1127
      %v1129 = vpop.f32.mrb[0].mxu0
      %v1130 = vadd.f32 %v346, %v1129
      %1131 = vmatprep.mubr.bf16.mxu0 %v586
      %1132 = vmatmul.mubr.bf16.gmra.mrb[0].mxu0 %v585
      %v1133 = vpop.f32.mrb[0].mxu0
      %v1134 = vadd.f32 %v342, %v1133
      %v1135 = vpop.f32.mrb[0].mxu0
      %v1136 = vadd.f32 %v346, %v1135
      %v1137 = vpop.f32.mrb[0].mxu0
      %v1138 = vadd.f32 %v342, %v1137
      %v1139 = vpop.f32.mrb[0].mxu0
      %v1140 = vadd.f32 %v346, %v1139
      %1141 = vmatprep.mubr.bf16.mxu0 %v590
      %1142 = vmatmul.mubr.bf16.gmra.mrb[0].mxu0 %v589
      %v1143 = vpop.f32.mrb[0].mxu0
      %v1144 = vadd.f32 %v342, %v1143
      %v1145 = vpop.f32.mrb[0].mxu0
      %v1146 = vadd.f32 %v346, %v1145
      %v1147 = vpop.f32.mrb[0].mxu0
      %v1148 = vadd.f32 %v342, %v1147
      %v1149 = vpop.f32.mrb[0].mxu0
      %v1150 = vadd.f32 %v346, %v1149
      %1151 = vmatprep.mubr.bf16.mxu0 %v594
      %1152 = vmatmul.mubr.bf16.gmra.mrb[0].mxu0 %v593
      %v1153 = vpop.f32.mrb[0].mxu0
      %v1154 = vadd.f32 %v342, %v1153
      %v1155 = vpop.f32.mrb[0].mxu0
      %v1156 = vadd.f32 %v346, %v1155
      %v1157 = vpop.f32.mrb[0].mxu0
      %v1158 = vadd.f32 %v342, %v1157
      %v1159 = vpop.f32.mrb[0].mxu0
      %v1160 = vadd.f32 %v346, %v1159
      %1161 = vmatprep.mubr.bf16.mxu0 %v598
      %1162 = vmatmul.mubr.bf16.gmra.mrb[0].mxu0 %v597
      %v1163 = vpop.f32.mrb[0].mxu0
      %v1164 = vadd.f32 %v342, %v1163
      %v1165 = vpop.f32.mrb[0].mxu0
      %v1166 = vadd.f32 %v346, %v1165
      %v1167 = vpop.f32.mrb[0].mxu0
      %v1168 = vadd.f32 %v342, %v1167
      %v1169 = vpop.f32.mrb[0].mxu0
      %v1170 = vadd.f32 %v346, %v1169
      %1171 = vmatprep.mubr.bf16.mxu0 %v602
      %1172 = vmatmul.mubr.bf16.gmra.mrb[0].mxu0 %v601
      %v1173 = vpop.f32.mrb[0].mxu0
      %v1174 = vadd.f32 %v342, %v1173
      %v1175 = vpop.f32.mrb[0].mxu0
      %v1176 = vadd.f32 %v346, %v1175
      %v1177 = vpop.f32.mrb[0].mxu0
      %v1178 = vadd.f32 %v342, %v1177
      %v1179 = vpop.f32.mrb[0].mxu0
      %v1180 = vadd.f32 %v346, %v1179
      %1181 = vdwg.mxu0
      %1182 = vmatprep.subr.bf16.mxu0 %v894
      %1183 = vmatpush1.bf16.msra.mxu0 %v893
      %1184 = vmatprep.subr.bf16.mxu0 %v896
      %1185 = vmatpush1.bf16.msra.mxu0 %v895
      %1186 = vmatprep.subr.bf16.mxu0 %v898
      %1187 = vmatpush1.bf16.msra.mxu0 %v897
      %1188 = vmatprep.subr.bf16.mxu0 %v900
      %1189 = vmatpush1.bf16.msra.mxu0 %v899
      %1190 = vmatprep.subr.bf16.mxu0 %v902
      %1191 = vmatpush1.bf16.msra.mxu0 %v901
      %1192 = vmatprep.subr.bf16.mxu0 %v904
      %1193 = vmatpush1.bf16.msra.mxu0 %v903
      %1194 = vmatprep.subr.bf16.mxu0 %v906
      %1195 = vmatpush1.bf16.msra.mxu0 %v905
      %1196 = vmatprep.subr.bf16.mxu0 %v908
      %1197 = vmatpush1.bf16.msra.mxu0 %v907
      %1198 = vmatprep.subr.bf16.mxu0 %v910
      %1199 = vmatpush1.bf16.msra.mxu0 %v909
      %1200 = vmatprep.subr.bf16.mxu0 %v912
      %1201 = vmatpush1.bf16.msra.mxu0 %v911
      %1202 = vmatprep.subr.bf16.mxu0 %v914
      %1203 = vmatpush1.bf16.msra.mxu0 %v913
      %1204 = vmatprep.subr.bf16.mxu0 %v916
      %1205 = vmatpush1.bf16.msra.mxu0 %v915
      %1206 = vmatprep.subr.bf16.mxu0 %v918
      %1207 = vmatpush1.bf16.msra.mxu0 %v917
      %1208 = vmatprep.subr.bf16.mxu0 %v920
      %1209 = vmatpush1.bf16.msra.mxu0 %v919
      %1210 = vmatprep.subr.bf16.mxu0 %v922
      %1211 = vmatpush1.bf16.msra.mxu0 %v921
      %1212 = vmatprep.subr.bf16.mxu0 %v924
      %1213 = vmatpush1.bf16.msra.mxu0 %v923
      %1214 = vmatprep.mubr.bf16.mxu0 %v544
      %1215 = vmatmul.mubr.bf16.gmra.mrb[0].mxu0 %v543
      %v1216 = vpop.f32.mrb[0].mxu0
      %v1217 = vadd.f32 %v1024, %v1216
      %v1218 = vpop.f32.mrb[0].mxu0
      %v1219 = vadd.f32 %v1026, %v1218
      %v1220 = vpop.f32.mrb[0].mxu0
      %v1221 = vadd.f32 %v1028, %v1220
      %v1222 = vpop.f32.mrb[0].mxu0
      %v1223 = vadd.f32 %v1030, %v1222
      %1224 = vmatprep.mubr.bf16.mxu0 %v548
      %1225 = vmatmul.mubr.bf16.gmra.mrb[0].mxu0 %v547
      %v1226 = vpop.f32.mrb[0].mxu0
      %v1227 = vadd.f32 %v1034, %v1226
      %v1228 = vpop.f32.mrb[0].mxu0
      %v1229 = vadd.f32 %v1036, %v1228
      %v1230 = vpop.f32.mrb[0].mxu0
      %v1231 = vadd.f32 %v1038, %v1230
      %v1232 = vpop.f32.mrb[0].mxu0
      %v1233 = vadd.f32 %v1040, %v1232
      %1234 = vmatprep.mubr.bf16.mxu0 %v552
      %1235 = vmatmul.mubr.bf16.gmra.mrb[0].mxu0 %v551
      %v1236 = vpop.f32.mrb[0].mxu0
      %v1237 = vadd.f32 %v1044, %v1236
      %v1238 = vpop.f32.mrb[0].mxu0
      %v1239 = vadd.f32 %v1046, %v1238
      %v1240 = vpop.f32.mrb[0].mxu0
      %v1241 = vadd.f32 %v1048, %v1240
      %v1242 = vpop.f32.mrb[0].mxu0
      %v1243 = vadd.f32 %v1050, %v1242
      %1244 = vmatprep.mubr.bf16.mxu0 %v556
      %1245 = vmatmul.mubr.bf16.gmra.mrb[0].mxu0 %v555
      %v1246 = vpop.f32.mrb[0].mxu0
      %v1247 = vadd.f32 %v1054, %v1246
      %v1248 = vpop.f32.mrb[0].mxu0
      %v1249 = vadd.f32 %v1056, %v1248
      %v1250 = vpop.f32.mrb[0].mxu0
      %v1251 = vadd.f32 %v1058, %v1250
      %v1252 = vpop.f32.mrb[0].mxu0
      %v1253 = vadd.f32 %v1060, %v1252
      %1254 = vmatprep.mubr.bf16.mxu0 %v560
      %1255 = vmatmul.mubr.bf16.gmra.mrb[0].mxu0 %v559
      %v1256 = vpop.f32.mrb[0].mxu0
      %v1257 = vadd.f32 %v1064, %v1256
      %v1258 = vpop.f32.mrb[0].mxu0
      %v1259 = vadd.f32 %v1066, %v1258
      %v1260 = vpop.f32.mrb[0].mxu0
      %v1261 = vadd.f32 %v1068, %v1260
      %v1262 = vpop.f32.mrb[0].mxu0
      %v1263 = vadd.f32 %v1070, %v1262
      %1264 = vmatprep.mubr.bf16.mxu0 %v564
      %1265 = vmatmul.mubr.bf16.gmra.mrb[0].mxu0 %v563
      %v1266 = vpop.f32.mrb[0].mxu0
      %v1267 = vadd.f32 %v1074, %v1266
      %v1268 = vpop.f32.mrb[0].mxu0
      %v1269 = vadd.f32 %v1076, %v1268
      %v1270 = vpop.f32.mrb[0].mxu0
      %v1271 = vadd.f32 %v1078, %v1270
      %v1272 = vpop.f32.mrb[0].mxu0
      %v1273 = vadd.f32 %v1080, %v1272
      %1274 = vmatprep.mubr.bf16.mxu0 %v568
      %1275 = vmatmul.mubr.bf16.gmra.mrb[0].mxu0 %v567
      %v1276 = vpop.f32.mrb[0].mxu0
      %v1277 = vadd.f32 %v1084, %v1276
      %v1278 = vpop.f32.mrb[0].mxu0
      %v1279 = vadd.f32 %v1086, %v1278
      %v1280 = vpop.f32.mrb[0].mxu0
      %v1281 = vadd.f32 %v1088, %v1280
      %v1282 = vpop.f32.mrb[0].mxu0
      %v1283 = vadd.f32 %v1090, %v1282
      %1284 = vmatprep.mubr.bf16.mxu0 %v572
      %1285 = vmatmul.mubr.bf16.gmra.mrb[0].mxu0 %v571
      %v1286 = vpop.f32.mrb[0].mxu0
      %v1287 = vadd.f32 %v1094, %v1286
      %v1288 = vpop.f32.mrb[0].mxu0
      %v1289 = vadd.f32 %v1096, %v1288
      %v1290 = vpop.f32.mrb[0].mxu0
      %v1291 = vadd.f32 %v1098, %v1290
      %v1292 = vpop.f32.mrb[0].mxu0
      %v1293 = vadd.f32 %v1100, %v1292
      %1294 = vmatprep.mubr.bf16.mxu0 %v576
      %1295 = vmatmul.mubr.bf16.gmra.mrb[0].mxu0 %v575
      %v1296 = vpop.f32.mrb[0].mxu0
      %v1297 = vadd.f32 %v1104, %v1296
      %v1298 = vpop.f32.mrb[0].mxu0
      %v1299 = vadd.f32 %v1106, %v1298
      %v1300 = vpop.f32.mrb[0].mxu0
      %v1301 = vadd.f32 %v1108, %v1300
      %v1302 = vpop.f32.mrb[0].mxu0
      %v1303 = vadd.f32 %v1110, %v1302
      %1304 = vmatprep.mubr.bf16.mxu0 %v580
      %1305 = vmatmul.mubr.bf16.gmra.mrb[0].mxu0 %v579
      %v1306 = vpop.f32.mrb[0].mxu0
      %v1307 = vadd.f32 %v1114, %v1306
      %v1308 = vpop.f32.mrb[0].mxu0
      %v1309 = vadd.f32 %v1116, %v1308
      %v1310 = vpop.f32.mrb[0].mxu0
      %v1311 = vadd.f32 %v1118, %v1310
      %v1312 = vpop.f32.mrb[0].mxu0
      %v1313 = vadd.f32 %v1120, %v1312
      %1314 = vmatprep.mubr.bf16.mxu0 %v584
      %1315 = vmatmul.mubr.bf16.gmra.mrb[0].mxu0 %v583
      %v1316 = vpop.f32.mrb[0].mxu0
      %v1317 = vadd.f32 %v1124, %v1316
      %v1318 = vpop.f32.mrb[0].mxu0
      %v1319 = vadd.f32 %v1126, %v1318
      %v1320 = vpop.f32.mrb[0].mxu0
      %v1321 = vadd.f32 %v1128, %v1320
      %v1322 = vpop.f32.mrb[0].mxu0
      %v1323 = vadd.f32 %v1130, %v1322
      %1324 = vmatprep.mubr.bf16.mxu0 %v588
      %1325 = vmatmul.mubr.bf16.gmra.mrb[0].mxu0 %v587
      %v1326 = vpop.f32.mrb[0].mxu0
      %v1327 = vadd.f32 %v1134, %v1326
      %v1328 = vpop.f32.mrb[0].mxu0
      %v1329 = vadd.f32 %v1136, %v1328
      %v1330 = vpop.f32.mrb[0].mxu0
      %v1331 = vadd.f32 %v1138, %v1330
      %v1332 = vpop.f32.mrb[0].mxu0
      %v1333 = vadd.f32 %v1140, %v1332
      %1334 = vmatprep.mubr.bf16.mxu0 %v592
      %1335 = vmatmul.mubr.bf16.gmra.mrb[0].mxu0 %v591
      %v1336 = vpop.f32.mrb[0].mxu0
      %v1337 = vadd.f32 %v1144, %v1336
      %v1338 = vpop.f32.mrb[0].mxu0
      %v1339 = vadd.f32 %v1146, %v1338
      %v1340 = vpop.f32.mrb[0].mxu0
      %v1341 = vadd.f32 %v1148, %v1340
      %v1342 = vpop.f32.mrb[0].mxu0
      %v1343 = vadd.f32 %v1150, %v1342
      %1344 = vmatprep.mubr.bf16.mxu0 %v596
      %1345 = vmatmul.mubr.bf16.gmra.mrb[0].mxu0 %v595
      %v1346 = vpop.f32.mrb[0].mxu0
      %v1347 = vadd.f32 %v1154, %v1346
      %v1348 = vpop.f32.mrb[0].mxu0
      %v1349 = vadd.f32 %v1156, %v1348
      %v1350 = vpop.f32.mrb[0].mxu0
      %v1351 = vadd.f32 %v1158, %v1350
      %v1352 = vpop.f32.mrb[0].mxu0
      %v1353 = vadd.f32 %v1160, %v1352
      %1354 = vmatprep.mubr.bf16.mxu0 %v600
      %1355 = vmatmul.mubr.bf16.gmra.mrb[0].mxu0 %v599
      %v1356 = vpop.f32.mrb[0].mxu0
      %v1357 = vadd.f32 %v1164, %v1356
      %v1358 = vpop.f32.mrb[0].mxu0
      %v1359 = vadd.f32 %v1166, %v1358
      %v1360 = vpop.f32.mrb[0].mxu0
      %v1361 = vadd.f32 %v1168, %v1360
      %v1362 = vpop.f32.mrb[0].mxu0
      %v1363 = vadd.f32 %v1170, %v1362
      %1364 = vmatprep.mubr.bf16.mxu0 %v604
      %1365 = vmatmul.mubr.bf16.gmra.mrb[0].mxu0 %v603
      %v1366 = vpop.f32.mrb[0].mxu0
      %v1367 = vadd.f32 %v1174, %v1366
      %v1368 = vpop.f32.mrb[0].mxu0
      %v1369 = vadd.f32 %v1176, %v1368
      %v1370 = vpop.f32.mrb[0].mxu0
      %v1371 = vadd.f32 %v1178, %v1370
      %v1372 = vpop.f32.mrb[0].mxu0
      %v1373 = vadd.f32 %v1180, %v1372
      %1374 = vdwg.mxu0
      %1375 = vst [vmem:[%s202] sm:$0xff] %v1217
      %1376 = vst [vmem:[%s202 + $0x8] sm:$0xff] %v1219
      %1377 = vst [vmem:[%s202 + $0x10] sm:$0xff] %v1221
      %1378 = vst [vmem:[%s202 + $0x18] sm:$0xff] %v1223
      %1379 = vst [vmem:[%s202 + $0x20] sm:$0xff] %v1227
      %1380 = vst [vmem:[%s202 + $0x28] sm:$0xff] %v1229
      %1381 = vst [vmem:[%s202 + $0x30] sm:$0xff] %v1231
      %1382 = vst [vmem:[%s202 + $0x38] sm:$0xff] %v1233
      %1383 = vst [vmem:[%s202 + $0x40] sm:$0xff] %v1237
      %1384 = vst [vmem:[%s202 + $0x48] sm:$0xff] %v1239
      %1385 = vst [vmem:[%s202 + $0x50] sm:$0xff] %v1241
      %1386 = vst [vmem:[%s202 + $0x58] sm:$0xff] %v1243
      %1387 = vst [vmem:[%s202 + $0x60] sm:$0xff] %v1247
      %1388 = vst [vmem:[%s202 + $0x68] sm:$0xff] %v1249
      %1389 = vst [vmem:[%s202 + $0x70] sm:$0xff] %v1251
      %1390 = vst [vmem:[%s202 + $0x78] sm:$0xff] %v1253
      %1391 = vst [vmem:[%s202 + $0x80] sm:$0xff] %v1257
      %1392 = vst [vmem:[%s202 + $0x88] sm:$0xff] %v1259
      %1393 = vst [vmem:[%s202 + $0x90] sm:$0xff] %v1261
      %1394 = vst [vmem:[%s202 + $0x98] sm:$0xff] %v1263
      %1395 = vst [vmem:[%s202 + $0xa0] sm:$0xff] %v1267
      %1396 = vst [vmem:[%s202 + $0xa8] sm:$0xff] %v1269
      %1397 = vst [vmem:[%s202 + $0xb0] sm:$0xff] %v1271
      %1398 = vst [vmem:[%s202 + $0xb8] sm:$0xff] %v1273
      %1399 = vst [vmem:[%s202 + $0xc0] sm:$0xff] %v1277
      %1400 = vst [vmem:[%s202 + $0xc8] sm:$0xff] %v1279
      %1401 = vst [vmem:[%s202 + $0xd0] sm:$0xff] %v1281
      %1402 = vst [vmem:[%s202 + $0xd8] sm:$0xff] %v1283
      %1403 = vst [vmem:[%s202 + $0xe0] sm:$0xff] %v1287
      %1404 = vst [vmem:[%s202 + $0xe8] sm:$0xff] %v1289
      %1405 = vst [vmem:[%s202 + $0xf0] sm:$0xff] %v1291
      %1406 = vst [vmem:[%s202 + $0xf8] sm:$0xff] %v1293
      %1407 = vst [vmem:[%s202 + $0x100] sm:$0xff] %v1297
      %1408 = vst [vmem:[%s202 + $0x108] sm:$0xff] %v1299
      %1409 = vst [vmem:[%s202 + $0x110] sm:$0xff] %v1301
      %1410 = vst [vmem:[%s202 + $0x118] sm:$0xff] %v1303
      %1411 = vst [vmem:[%s202 + $0x120] sm:$0xff] %v1307
      %1412 = vst [vmem:[%s202 + $0x128] sm:$0xff] %v1309
      %1413 = vst [vmem:[%s202 + $0x130] sm:$0xff] %v1311
      %1414 = vst [vmem:[%s202 + $0x138] sm:$0xff] %v1313
      %1415 = vst [vmem:[%s202 + $0x140] sm:$0xff] %v1317
      %1416 = vst [vmem:[%s202 + $0x148] sm:$0xff] %v1319
      %1417 = vst [vmem:[%s202 + $0x150] sm:$0xff] %v1321
      %1418 = vst [vmem:[%s202 + $0x158] sm:$0xff] %v1323
      %1419 = vst [vmem:[%s202 + $0x160] sm:$0xff] %v1327
      %1420 = vst [vmem:[%s202 + $0x168] sm:$0xff] %v1329
      %1421 = vst [vmem:[%s202 + $0x170] sm:$0xff] %v1331
      %1422 = vst [vmem:[%s202 + $0x178] sm:$0xff] %v1333
      %1423 = vst [vmem:[%s202 + $0x180] sm:$0xff] %v1337
      %1424 = vst [vmem:[%s202 + $0x188] sm:$0xff] %v1339
      %1425 = vst [vmem:[%s202 + $0x190] sm:$0xff] %v1341
      %1426 = vst [vmem:[%s202 + $0x198] sm:$0xff] %v1343
      %1427 = vst [vmem:[%s202 + $0x1a0] sm:$0xff] %v1347
      %1428 = vst [vmem:[%s202 + $0x1a8] sm:$0xff] %v1349
      %1429 = vst [vmem:[%s202 + $0x1b0] sm:$0xff] %v1351
      %1430 = vst [vmem:[%s202 + $0x1b8] sm:$0xff] %v1353
      %1431 = vst [vmem:[%s202 + $0x1c0] sm:$0xff] %v1357
      %1432 = vst [vmem:[%s202 + $0x1c8] sm:$0xff] %v1359
      %1433 = vst [vmem:[%s202 + $0x1d0] sm:$0xff] %v1361
      %1434 = vst [vmem:[%s202 + $0x1d8] sm:$0xff] %v1363
      %1435 = vst [vmem:[%s202 + $0x1e0] sm:$0xff] %v1367
      %1436 = vst [vmem:[%s202 + $0x1e8] sm:$0xff] %v1369
      %1437 = vst [vmem:[%s202 + $0x1f0] sm:$0xff] %v1371
      %1438 = vst [vmem:[%s202 + $0x1f8] sm:$0xff] %v1373
      %s1439 = smul.u32 %s16, 256
      %v1440 = vlaneseq
      %v1441 = vshrl.u32 %v1440, 7
      %v1442 = vadd.s32 %v1441, 8
      %v1443 = vadd.s32 %v1441, 16
      %v1444 = vadd.s32 %v1441, 24
      %v1445 = vadd.s32 %v1441, 32
      %v1446 = vadd.s32 %v1441, 40
      %v1447 = vadd.s32 %v1441, 48
      %v1448 = vadd.s32 %v1441, 56
      %v1449 = vadd.s32 %v1441, 64
      %v1450 = vadd.s32 %v1441, 72
      %v1451 = vadd.s32 %v1441, 80
      %v1452 = vadd.s32 %v1441, 88
      %v1453 = vadd.s32 %v1441, 96
      %v1454 = vadd.s32 %v1441, 104
      %v1455 = vadd.s32 %v1441, 112
      %v1456 = vadd.s32 %v1441, 120
      %v1457 = vadd.s32 %v1441, 128
      %v1458 = vadd.s32 %v1441, 136
      %v1459 = vadd.s32 %v1441, 144
      %v1460 = vadd.s32 %v1441, 152
      %v1461 = vadd.s32 %v1441, 160
      %v1462 = vadd.s32 %v1441, 168
      %v1463 = vadd.s32 %v1441, 176
      %v1464 = vadd.s32 %v1441, 184
      %v1465 = vadd.s32 %v1441, 192
      %v1466 = vadd.s32 %v1441, 200
      %v1467 = vadd.s32 %v1441, 208
      %v1468 = vadd.s32 %v1441, 216
      %v1469 = vadd.s32 %v1441, 224
      %v1470 = vadd.s32 %v1441, 232
      %v1471 = vadd.s32 %v1441, 240
      %v1472 = vadd.s32 %v1441, 248
      %v1473 = vstv %s1439
      %v1474 = vadd.s32 %v1473, %v1441
      %v1475 = vadd.s32 %v1473, %v1442
      %v1476 = vadd.s32 %v1473, %v1443
      %v1477 = vadd.s32 %v1473, %v1444
      %v1478 = vadd.s32 %v1473, %v1445
      %v1479 = vadd.s32 %v1473, %v1446
      %v1480 = vadd.s32 %v1473, %v1447
      %v1481 = vadd.s32 %v1473, %v1448
      %v1482 = vadd.s32 %v1473, %v1449
      %v1483 = vadd.s32 %v1473, %v1450
      %v1484 = vadd.s32 %v1473, %v1451
      %v1485 = vadd.s32 %v1473, %v1452
      %v1486 = vadd.s32 %v1473, %v1453
      %v1487 = vadd.s32 %v1473, %v1454
      %v1488 = vadd.s32 %v1473, %v1455
      %v1489 = vadd.s32 %v1473, %v1456
      %v1490 = vadd.s32 %v1473, %v1457
      %v1491 = vadd.s32 %v1473, %v1458
      %v1492 = vadd.s32 %v1473, %v1459
      %v1493 = vadd.s32 %v1473, %v1460
      %v1494 = vadd.s32 %v1473, %v1461
      %v1495 = vadd.s32 %v1473, %v1462
      %v1496 = vadd.s32 %v1473, %v1463
      %v1497 = vadd.s32 %v1473, %v1464
      %v1498 = vadd.s32 %v1473, %v1465
      %v1499 = vadd.s32 %v1473, %v1466
      %v1500 = vadd.s32 %v1473, %v1467
      %v1501 = vadd.s32 %v1473, %v1468
      %v1502 = vadd.s32 %v1473, %v1469
      %v1503 = vadd.s32 %v1473, %v1470
      %v1504 = vadd.s32 %v1473, %v1471
      %v1505 = vadd.s32 %v1473, %v1472
      %vm1506 = vcmp.lt.s32.totalorder %v1474, 512
      %vm1507 = vcmp.lt.s32.totalorder %v1475, 512
      %vm1508 = vcmp.lt.s32.totalorder %v1476, 512
      %vm1509 = vcmp.lt.s32.totalorder %v1477, 512
      %vm1510 = vcmp.lt.s32.totalorder %v1478, 512
      %vm1511 = vcmp.lt.s32.totalorder %v1479, 512
      %vm1512 = vcmp.lt.s32.totalorder %v1480, 512
      %vm1513 = vcmp.lt.s32.totalorder %v1481, 512
      %vm1514 = vcmp.lt.s32.totalorder %v1482, 512
      %vm1515 = vcmp.lt.s32.totalorder %v1483, 512
      %vm1516 = vcmp.lt.s32.totalorder %v1484, 512
      %vm1517 = vcmp.lt.s32.totalorder %v1485, 512
      %vm1518 = vcmp.lt.s32.totalorder %v1486, 512
      %vm1519 = vcmp.lt.s32.totalorder %v1487, 512
      %vm1520 = vcmp.lt.s32.totalorder %v1488, 512
      %vm1521 = vcmp.lt.s32.totalorder %v1489, 512
      %vm1522 = vcmp.lt.s32.totalorder %v1490, 512
      %vm1523 = vcmp.lt.s32.totalorder %v1491, 512
      %vm1524 = vcmp.lt.s32.totalorder %v1492, 512
      %vm1525 = vcmp.lt.s32.totalorder %v1493, 512
      %vm1526 = vcmp.lt.s32.totalorder %v1494, 512
      %vm1527 = vcmp.lt.s32.totalorder %v1495, 512
      %vm1528 = vcmp.lt.s32.totalorder %v1496, 512
      %vm1529 = vcmp.lt.s32.totalorder %v1497, 512
      %vm1530 = vcmp.lt.s32.totalorder %v1498, 512
      %vm1531 = vcmp.lt.s32.totalorder %v1499, 512
      %vm1532 = vcmp.lt.s32.totalorder %v1500, 512
      %vm1533 = vcmp.lt.s32.totalorder %v1501, 512
      %vm1534 = vcmp.lt.s32.totalorder %v1502, 512
      %vm1535 = vcmp.lt.s32.totalorder %v1503, 512
      %vm1536 = vcmp.lt.s32.totalorder %v1504, 512
      %vm1537 = vcmp.lt.s32.totalorder %v1505, 512
      %v1538 = vsel %vm1506, %v1217, 0.0
      %v1539 = vsel %vm1506, %v1219, 0.0
      %v1540 = vsel %vm1507, %v1221, 0.0
      %v1541 = vsel %vm1507, %v1223, 0.0
      %v1542 = vsel %vm1508, %v1227, 0.0
      %v1543 = vsel %vm1508, %v1229, 0.0
      %v1544 = vsel %vm1509, %v1231, 0.0
      %v1545 = vsel %vm1509, %v1233, 0.0
      %v1546 = vsel %vm1510, %v1237, 0.0
      %v1547 = vsel %vm1510, %v1239, 0.0
      %v1548 = vsel %vm1511, %v1241, 0.0
      %v1549 = vsel %vm1511, %v1243, 0.0
      %v1550 = vsel %vm1512, %v1247, 0.0
      %v1551 = vsel %vm1512, %v1249, 0.0
      %v1552 = vsel %vm1513, %v1251, 0.0
      %v1553 = vsel %vm1513, %v1253, 0.0
      %v1554 = vsel %vm1514, %v1257, 0.0
      %v1555 = vsel %vm1514, %v1259, 0.0
      %v1556 = vsel %vm1515, %v1261, 0.0
      %v1557 = vsel %vm1515, %v1263, 0.0
      %v1558 = vsel %vm1516, %v1267, 0.0
      %v1559 = vsel %vm1516, %v1269, 0.0
      %v1560 = vsel %vm1517, %v1271, 0.0
      %v1561 = vsel %vm1517, %v1273, 0.0
      %v1562 = vsel %vm1518, %v1277, 0.0
      %v1563 = vsel %vm1518, %v1279, 0.0
      %v1564 = vsel %vm1519, %v1281, 0.0
      %v1565 = vsel %vm1519, %v1283, 0.0
      %v1566 = vsel %vm1520, %v1287, 0.0
      %v1567 = vsel %vm1520, %v1289, 0.0
      %v1568 = vsel %vm1521, %v1291, 0.0
      %v1569 = vsel %vm1521, %v1293, 0.0
      %v1570 = vsel %vm1522, %v1297, 0.0
      %v1571 = vsel %vm1522, %v1299, 0.0
      %v1572 = vsel %vm1523, %v1301, 0.0
      %v1573 = vsel %vm1523, %v1303, 0.0
      %v1574 = vsel %vm1524, %v1307, 0.0
      %v1575 = vsel %vm1524, %v1309, 0.0
      %v1576 = vsel %vm1525, %v1311, 0.0
      %v1577 = vsel %vm1525, %v1313, 0.0
      %v1578 = vsel %vm1526, %v1317, 0.0
      %v1579 = vsel %vm1526, %v1319, 0.0
      %v1580 = vsel %vm1527, %v1321, 0.0
      %v1581 = vsel %vm1527, %v1323, 0.0
      %v1582 = vsel %vm1528, %v1327, 0.0
      %v1583 = vsel %vm1528, %v1329, 0.0
      %v1584 = vsel %vm1529, %v1331, 0.0
      %v1585 = vsel %vm1529, %v1333, 0.0
      %v1586 = vsel %vm1530, %v1337, 0.0
      %v1587 = vsel %vm1530, %v1339, 0.0
      %v1588 = vsel %vm1531, %v1341, 0.0
      %v1589 = vsel %vm1531, %v1343, 0.0
      %v1590 = vsel %vm1532, %v1347, 0.0
      %v1591 = vsel %vm1532, %v1349, 0.0
      %v1592 = vsel %vm1533, %v1351, 0.0
      %v1593 = vsel %vm1533, %v1353, 0.0
      %v1594 = vsel %vm1534, %v1357, 0.0
      %v1595 = vsel %vm1534, %v1359, 0.0
      %v1596 = vsel %vm1535, %v1361, 0.0
      %v1597 = vsel %vm1535, %v1363, 0.0
      %v1598 = vsel %vm1536, %v1367, 0.0
      %v1599 = vsel %vm1536, %v1369, 0.0
      %v1600 = vsel %vm1537, %v1371, 0.0
      %v1601 = vsel %vm1537, %v1373, 0.0
      %v1602 = vadd.f32 %v1538, %v1540
      %v1603 = vadd.f32 %v1602, %v1542
      %v1604 = vadd.f32 %v1603, %v1544
      %v1605 = vadd.f32 %v1604, %v1546
      %v1606 = vadd.f32 %v1605, %v1548
      %v1607 = vadd.f32 %v1606, %v1550
      %v1608 = vadd.f32 %v1607, %v1552
      %v1609 = vadd.f32 %v1608, %v1554
      %v1610 = vadd.f32 %v1609, %v1556
      %v1611 = vadd.f32 %v1610, %v1558
      %v1612 = vadd.f32 %v1611, %v1560
      %v1613 = vadd.f32 %v1612, %v1562
      %v1614 = vadd.f32 %v1613, %v1564
      %v1615 = vadd.f32 %v1614, %v1566
      %v1616 = vadd.f32 %v1615, %v1568
      %v1617 = vadd.f32 %v1616, %v1570
      %v1618 = vadd.f32 %v1617, %v1572
      %v1619 = vadd.f32 %v1618, %v1574
      %v1620 = vadd.f32 %v1619, %v1576
      %v1621 = vadd.f32 %v1620, %v1578
      %v1622 = vadd.f32 %v1621, %v1580
      %v1623 = vadd.f32 %v1622, %v1582
      %v1624 = vadd.f32 %v1623, %v1584
      %v1625 = vadd.f32 %v1624, %v1586
      %v1626 = vadd.f32 %v1625, %v1588
      %v1627 = vadd.f32 %v1626, %v1590
      %v1628 = vadd.f32 %v1627, %v1592
      %v1629 = vadd.f32 %v1628, %v1594
      %v1630 = vadd.f32 %v1629, %v1596
      %v1631 = vadd.f32 %v1630, %v1598
      %v1632 = vadd.f32 %v1631, %v1600
      %v1633 = vrot.slane %v1632, 4
      %v1634 = vadd.f32 %v1632, %v1633
      %v1635 = vrot.slane %v1634, 2
      %v1636 = vadd.f32 %v1634, %v1635
      %v1637 = vrot.slane %v1636, 1
      %v1638 = vadd.f32 %v1636, %v1637
      %v1639 = vadd.f32 %v1539, %v1541
      %v1640 = vadd.f32 %v1639, %v1543
      %v1641 = vadd.f32 %v1640, %v1545
      %v1642 = vadd.f32 %v1641, %v1547
      %v1643 = vadd.f32 %v1642, %v1549
      %v1644 = vadd.f32 %v1643, %v1551
      %v1645 = vadd.f32 %v1644, %v1553
      %v1646 = vadd.f32 %v1645, %v1555
      %v1647 = vadd.f32 %v1646, %v1557
      %v1648 = vadd.f32 %v1647, %v1559
      %v1649 = vadd.f32 %v1648, %v1561
      %v1650 = vadd.f32 %v1649, %v1563
      %v1651 = vadd.f32 %v1650, %v1565
      %v1652 = vadd.f32 %v1651, %v1567
      %v1653 = vadd.f32 %v1652, %v1569
      %v1654 = vadd.f32 %v1653, %v1571
      %v1655 = vadd.f32 %v1654, %v1573
      %v1656 = vadd.f32 %v1655, %v1575
      %v1657 = vadd.f32 %v1656, %v1577
      %v1658 = vadd.f32 %v1657, %v1579
      %v1659 = vadd.f32 %v1658, %v1581
      %v1660 = vadd.f32 %v1659, %v1583
      %v1661 = vadd.f32 %v1660, %v1585
      %v1662 = vadd.f32 %v1661, %v1587
      %v1663 = vadd.f32 %v1662, %v1589
      %v1664 = vadd.f32 %v1663, %v1591
      %v1665 = vadd.f32 %v1664, %v1593
      %v1666 = vadd.f32 %v1665, %v1595
      %v1667 = vadd.f32 %v1666, %v1597
      %v1668 = vadd.f32 %v1667, %v1599
      %v1669 = vadd.f32 %v1668, %v1601
      %v1670 = vrot.slane %v1669, 4
      %v1671 = vadd.f32 %v1669, %v1670
      %v1672 = vrot.slane %v1671, 2
      %v1673 = vadd.f32 %v1671, %v1672
      %v1674 = vrot.slane %v1673, 1
      %v1675 = vadd.f32 %v1673, %v1674
      %v1676 = vmul.f32 %v1538, %v1538
      %v1677 = vmul.f32 %v1539, %v1539
      %v1678 = vmul.f32 %v1540, %v1540
      %v1679 = vmul.f32 %v1541, %v1541
      %v1680 = vmul.f32 %v1542, %v1542
      %v1681 = vmul.f32 %v1543, %v1543
      %v1682 = vmul.f32 %v1544, %v1544
      %v1683 = vmul.f32 %v1545, %v1545
      %v1684 = vmul.f32 %v1546, %v1546
      %v1685 = vmul.f32 %v1547, %v1547
      %v1686 = vmul.f32 %v1548, %v1548
      %v1687 = vmul.f32 %v1549, %v1549
      %v1688 = vmul.f32 %v1550, %v1550
      %v1689 = vmul.f32 %v1551, %v1551
      %v1690 = vmul.f32 %v1552, %v1552
      %v1691 = vmul.f32 %v1553, %v1553
      %v1692 = vmul.f32 %v1554, %v1554
      %v1693 = vmul.f32 %v1555, %v1555
      %v1694 = vmul.f32 %v1556, %v1556
      %v1695 = vmul.f32 %v1557, %v1557
      %v1696 = vmul.f32 %v1558, %v1558
      %v1697 = vmul.f32 %v1559, %v1559
      %v1698 = vmul.f32 %v1560, %v1560
      %v1699 = vmul.f32 %v1561, %v1561
      %v1700 = vmul.f32 %v1562, %v1562
      %v1701 = vmul.f32 %v1563, %v1563
      %v1702 = vmul.f32 %v1564, %v1564
      %v1703 = vmul.f32 %v1565, %v1565
      %v1704 = vmul.f32 %v1566, %v1566
      %v1705 = vmul.f32 %v1567, %v1567
      %v1706 = vmul.f32 %v1568, %v1568
      %v1707 = vmul.f32 %v1569, %v1569
      %v1708 = vmul.f32 %v1570, %v1570
      %v1709 = vmul.f32 %v1571, %v1571
      %v1710 = vmul.f32 %v1572, %v1572
      %v1711 = vmul.f32 %v1573, %v1573
      %v1712 = vmul.f32 %v1574, %v1574
      %v1713 = vmul.f32 %v1575, %v1575
      %v1714 = vmul.f32 %v1576, %v1576
      %v1715 = vmul.f32 %v1577, %v1577
      %v1716 = vmul.f32 %v1578, %v1578
      %v1717 = vmul.f32 %v1579, %v1579
      %v1718 = vmul.f32 %v1580, %v1580
      %v1719 = vmul.f32 %v1581, %v1581
      %v1720 = vmul.f32 %v1582, %v1582
      %v1721 = vmul.f32 %v1583, %v1583
      %v1722 = vmul.f32 %v1584, %v1584
      %v1723 = vmul.f32 %v1585, %v1585
      %v1724 = vmul.f32 %v1586, %v1586
      %v1725 = vmul.f32 %v1587, %v1587
      %v1726 = vmul.f32 %v1588, %v1588
      %v1727 = vmul.f32 %v1589, %v1589
      %v1728 = vmul.f32 %v1590, %v1590
      %v1729 = vmul.f32 %v1591, %v1591
      %v1730 = vmul.f32 %v1592, %v1592
      %v1731 = vmul.f32 %v1593, %v1593
      %v1732 = vmul.f32 %v1594, %v1594
      %v1733 = vmul.f32 %v1595, %v1595
      %v1734 = vmul.f32 %v1596, %v1596
      %v1735 = vmul.f32 %v1597, %v1597
      %v1736 = vmul.f32 %v1598, %v1598
      %v1737 = vmul.f32 %v1599, %v1599
      %v1738 = vmul.f32 %v1600, %v1600
      %v1739 = vmul.f32 %v1601, %v1601
      %v1740 = vadd.f32 %v1676, %v1678
      %v1741 = vadd.f32 %v1740, %v1680
      %v1742 = vadd.f32 %v1741, %v1682
      %v1743 = vadd.f32 %v1742, %v1684
      %v1744 = vadd.f32 %v1743, %v1686
      %v1745 = vadd.f32 %v1744, %v1688
      %v1746 = vadd.f32 %v1745, %v1690
      %v1747 = vadd.f32 %v1746, %v1692
      %v1748 = vadd.f32 %v1747, %v1694
      %v1749 = vadd.f32 %v1748, %v1696
      %v1750 = vadd.f32 %v1749, %v1698
      %v1751 = vadd.f32 %v1750, %v1700
      %v1752 = vadd.f32 %v1751, %v1702
      %v1753 = vadd.f32 %v1752, %v1704
      %v1754 = vadd.f32 %v1753, %v1706
      %v1755 = vadd.f32 %v1754, %v1708
      %v1756 = vadd.f32 %v1755, %v1710
      %v1757 = vadd.f32 %v1756, %v1712
      %v1758 = vadd.f32 %v1757, %v1714
      %v1759 = vadd.f32 %v1758, %v1716
      %v1760 = vadd.f32 %v1759, %v1718
      %v1761 = vadd.f32 %v1760, %v1720
      %v1762 = vadd.f32 %v1761, %v1722
      %v1763 = vadd.f32 %v1762, %v1724
      %v1764 = vadd.f32 %v1763, %v1726
      %v1765 = vadd.f32 %v1764, %v1728
      %v1766 = vadd.f32 %v1765, %v1730
      %v1767 = vadd.f32 %v1766, %v1732
      %v1768 = vadd.f32 %v1767, %v1734
      %v1769 = vadd.f32 %v1768, %v1736
      %v1770 = vadd.f32 %v1769, %v1738
      %v1771 = vrot.slane %v1770, 4
      %v1772 = vadd.f32 %v1770, %v1771
      %v1773 = vrot.slane %v1772, 2
      %v1774 = vadd.f32 %v1772, %v1773
      %v1775 = vrot.slane %v1774, 1
      %v1776 = vadd.f32 %v1774, %v1775
      %v1777 = vadd.f32 %v1677, %v1679
      %v1778 = vadd.f32 %v1777, %v1681
      %v1779 = vadd.f32 %v1778, %v1683
      %v1780 = vadd.f32 %v1779, %v1685
      %v1781 = vadd.f32 %v1780, %v1687
      %v1782 = vadd.f32 %v1781, %v1689
      %v1783 = vadd.f32 %v1782, %v1691
      %v1784 = vadd.f32 %v1783, %v1693
      %v1785 = vadd.f32 %v1784, %v1695
      %v1786 = vadd.f32 %v1785, %v1697
      %v1787 = vadd.f32 %v1786, %v1699
      %v1788 = vadd.f32 %v1787, %v1701
      %v1789 = vadd.f32 %v1788, %v1703
      %v1790 = vadd.f32 %v1789, %v1705
      %v1791 = vadd.f32 %v1790, %v1707
      %v1792 = vadd.f32 %v1791, %v1709
      %v1793 = vadd.f32 %v1792, %v1711
      %v1794 = vadd.f32 %v1793, %v1713
      %v1795 = vadd.f32 %v1794, %v1715
      %v1796 = vadd.f32 %v1795, %v1717
      %v1797 = vadd.f32 %v1796, %v1719
      %v1798 = vadd.f32 %v1797, %v1721
      %v1799 = vadd.f32 %v1798, %v1723
      %v1800 = vadd.f32 %v1799, %v1725
      %v1801 = vadd.f32 %v1800, %v1727
      %v1802 = vadd.f32 %v1801, %v1729
      %v1803 = vadd.f32 %v1802, %v1731
      %v1804 = vadd.f32 %v1803, %v1733
      %v1805 = vadd.f32 %v1804, %v1735
      %v1806 = vadd.f32 %v1805, %v1737
      %v1807 = vadd.f32 %v1806, %v1739
      %v1808 = vrot.slane %v1807, 4
      %v1809 = vadd.f32 %v1807, %v1808
      %v1810 = vrot.slane %v1809, 2
      %v1811 = vadd.f32 %v1809, %v1810
      %v1812 = vrot.slane %v1811, 1
      %v1813 = vadd.f32 %v1811, %v1812
      %vm1814 = vcmask 1040384
      %v1815 = vsel %vm1814, %v1638, %v1776
      %v1816 = vsel %vm1814, %v1675, %v1813
      %v1817 = vld [vmem:[#allocation2] sm:$0xf]
      %v1820 = vcombine.low %v1815, %v1816
      %v1822 = vunpack.c.l.s4 1983009808
      %v1823 = vunpack.c.0.s8 %v1822
      %v1824 = vlaneseq
      %v1825 = vshrl.u32 %v1824, 7
      %v1826 = vsub.s32 %v1823, %v1825
      %v1827 = vrot.slane %v1820, %v1826
      %v1829 = vadd.f32 %v1817, %v1827
      %1830 = vst [vmem:[#allocation2] sm:$0xf] %v1829
      %p1831 = scmp.eq.s32.totalorder %s16, 1
      // Predicated region
      $region37: #{linear_block_forward.2} parent=31 // pred_check
        %p1832 = pneg %p1831
      $region38: #{linear_block_forward.2} parent=31 // pred_check_branch
        %1834 = sbr.rel (%p1832) target = $region40
      $region39: #{linear_block_forward.2} parent=31 // pred_region
        %v1835 = vld [vmem:[#allocation2] ss:$2 sm:$0x3]
        %v1836 = vmul.f32 %v1835, 0.001953125
        %s1837 = scalar_lea.vmem [#allocation2], 1
        %v1838 = vld [vmem:[%s1837] ss:$2 sm:$0x3]
        %v1839 = vmul.f32 %v1838, 0.001953125
        %v1840 = vmul.f32 %v1836, %v1836
        %v1841 = vsub.f32 %v1839, %v1840
        %v1842 = vmax.f32 %v1841, 0.0
        %v1843 = vadd.f32 %v1842, 1e-05
        %v1844 = vrsqrt.pop %v1843
        %v1846 = vlaneseq
        %v1847 = vshrl.u32 %v1846, 7
        %v1848 = vsub.s32 0, %v1847
        %v1849 = vrot.slane %v1836, %v1848
        %v1850 = vlaneseq
        %v1851 = vshrl.u32 %v1850, 7
        %v1852 = vsub.s32 1, %v1851
        %v1853 = vrot.slane %v1836, %v1852
        %v1857 = vlaneseq
        %v1858 = vshrl.u32 %v1857, 7
        %v1859 = vsub.s32 0, %v1858
        %v1860 = vrot.slane %v1844, %v1859
        %v1861 = vlaneseq
        %v1862 = vshrl.u32 %v1861, 7
        %v1863 = vsub.s32 1, %v1862
        %v1864 = vrot.slane %v1844, %v1863
        %v1867 = vsel %vm1814, %v1849, %v1860
        %v1868 = vsel %vm1814, %v1853, %v1864
        %v1871 = vcombine.low %v1867, %v1868
        %v1873 = vunpack.c.l.s4 1983009808
        %v1874 = vunpack.c.0.s8 %v1873
        %v1875 = vlaneseq
        %v1876 = vshrl.u32 %v1875, 7
        %v1877 = vsub.s32 %v1874, %v1876
        %v1878 = vrot.slane %v1871, %v1877
        %1880 = vst [vmem:[%s4] sm:$0xf] %v1878
      $region40: #{linear_block_forward.2} parent=31 // pred_fallthru
        _
      %s1881 = smul.u32 32, %s16
      %p1882 = scmp.lt.s32.totalorder %s1881, 63
      %s1883 = scalar_select %p1882, %s1881, 63
      %s1884 = smul.addr %s1883, 2
      %s1885 = smul.addr %s1884, 8
      %s1886 = scalar_lea.vmem %s3, %s1885
      // Predicated region
      $region41: #{linear_block_forward.2} parent=31 // pred_check
        %p1887 = pneg %p102
      $region42: #{linear_block_forward.2} parent=31 // pred_check_branch
        %1889 = sbr.rel (%p1887) target = $region44
      $region43: #{linear_block_forward.2} parent=31 // pred_region
        %s1890 = smul.u32 32, %s16
      $region44: #{linear_block_forward.2} parent=31 // pred_fallthru
        _
      // Predicated region
      $region45: #{linear_block_forward.2} parent=31 // pred_check
        %p1891 = pneg %p123
      $region46: #{linear_block_forward.2} parent=31 // pred_check_branch
        %1893 = sbr.rel (%p1891) target = $region48
      $region47: #{linear_block_forward.2} parent=31 // pred_region
        _
      $region48: #{linear_block_forward.2} parent=31 // pred_fallthru
        _
      // Predicated region
      $region49: #{linear_block_forward.2} parent=31 // pred_check
        %p1894 = pneg %p123
      $region50: #{linear_block_forward.2} parent=31 // pred_check_branch
        %1896 = sbr.rel (%p1894) target = $region52
      $region51: #{linear_block_forward.2} parent=31 // pred_region
        _
      $region52: #{linear_block_forward.2} parent=31 // pred_fallthru
        _
    $region32: #{linear_block_forward.2} parent=5 // pred_fallthru
      _
    %p1897 = scmp.le.s32.totalorder 2, %s11
    // Predicated region
    $region53: #{linear_block_forward.2} parent=5 // pred_check
      %p1898 = pneg %p1897
    $region54: #{linear_block_forward.2} parent=5 // pred_check_branch
      %1900 = sbr.rel (%p1898) target = $region56
    $region55: #{linear_block_forward.2} parent=5 // pred_region
      %s1901 = ssub.s32 %s11, 2
      // Predicated region
      $region57: #{linear_block_forward.2} parent=55 // pred_check
        %p1902 = pneg %p108
      $region58: #{linear_block_forward.2} parent=55 // pred_check_branch
        %1904 = sbr.rel (%p1902) target = $region60
      $region59: #{linear_block_forward.2} parent=55 // pred_region
        %s1905 = smul.u32 32, %s17
        %p1906 = scmp.lt.s32.totalorder %s1905, 63
        %s1907 = scalar_select %p1906, %s1905, 63
        %s1908 = smul.addr %s1907, 2
        %s1909 = smul.addr %s1908, 8
        %s1910 = scalar_lea.vmem %s3, %s1909
      $region60: #{linear_block_forward.2} parent=55 // pred_fallthru
        _
    $region56: #{linear_block_forward.2} parent=5 // pred_fallthru
      _
  $region6: #{linear_block_forward.2} parent=0 // loop_footer
    %s15 = sadd.s32 1, %s11
  $region7: #{linear_block_forward.2} parent=0 // loop_footer_branch
    %10 = sbr.rel target = $region3
  $region8: #{linear_block_forward.2} parent=0 // loop_exit
    _

</llo_original>
